<compile_context>
chip_gen: v6e
topology: v6e:2x2x1
jax: 0.10.0
libtpu: 0.0.40
codegen_flags: <defaults>
</compile_context>

<pallas_src>
from functools import partial

import jax
import jax.numpy as jnp
from jax.experimental import pallas as pl

NUM_CLASSES = 2      # nn.Linear(out_dim, 2) in the PyTorch module
LANE = 128           # lane-dense output / packed-vector width


# ------------------------------ fused kernel --------------------------------

def gcn_net_kernel(
    a0_t_ref, a1_t_ref, x_t_ref, p_t_ref,
    a0_p_ref, a1_p_ref, x_p_ref, p_p_ref,
    w1_t_ref, w2_t_ref, w1_p_ref, w2_p_ref,
    wf_ref, wc_ref, vec_ref,
    o_ref,
):
    f32 = jnp.float32
    V = vec_ref[...]            # (16, 128) packed small parameters, loaded once

    def vrow(i, d):             # static slice of the packed-vector block
        return V[i:i + 1, :d]

    def bn_lrelu(h, gamma, beta):
        # BatchNorm1d (training mode: batch mean / biased variance, eps=1e-5)
        mean = jnp.mean(h, axis=0, keepdims=True)
        var = jnp.mean((h - mean) ** 2, axis=0, keepdims=True)
        hn = (h - mean) * jax.lax.rsqrt(var + 1e-5) * gamma + beta
        # LeakyReLU(negative_slope=0.01)
        return jnp.where(hn >= 0, hn, 0.01 * hn)

    def branch(a0_ref, a1_ref, x_ref, p_ref, w1_ref, w2_ref, vb):
        # adjacencies loaded once, reused by both layers
        a0 = a0_ref[...]
        a1 = a1_ref[...]
        x = x_ref[...]
        d_in = x.shape[1]          # padded to a multiple of 8 by the wrapper
        hid = w1_ref.shape[1]
        out = w2_ref.shape[1]

        # ---- RGCN layer 1 (d_in -> hid, hid > d_in): aggregate-then-project.
        # Three separate dots against 8-aligned row slices of the stacked
        # weight (no lane concat).
        agg0 = jnp.dot(a0, x, preferred_element_type=f32)
        agg1 = jnp.dot(a1, x, preferred_element_type=f32)
        h = (jnp.dot(agg0, w1_ref[0:d_in, :], preferred_element_type=f32)
             + jnp.dot(agg1, w1_ref[d_in:2 * d_in, :], preferred_element_type=f32)
             + jnp.dot(x, w1_ref[2 * d_in:3 * d_in, :], preferred_element_type=f32)
             + vrow(vb + 0, hid))
        h = bn_lrelu(h, vrow(vb + 1, hid), vrow(vb + 2, hid))

        # ---- RGCN layer 2 (hid -> out, out < hid): project-then-aggregate.
        # Three separate projections (no non-aligned lane slices of a stacked
        # product), then aggregate.
        hw0 = jnp.dot(h, w2_ref[0:hid, :], preferred_element_type=f32)
        hw1 = jnp.dot(h, w2_ref[hid:2 * hid, :], preferred_element_type=f32)
        hwr = jnp.dot(h, w2_ref[2 * hid:3 * hid, :], preferred_element_type=f32)
        h2 = (jnp.dot(a0, hw0, preferred_element_type=f32)
              + jnp.dot(a1, hw1, preferred_element_type=f32)
              + hwr
              + vrow(vb + 3, out))
        h2 = bn_lrelu(h2, vrow(vb + 4, out), vrow(vb + 5, out))

        # ---- scatter_mean pooling as a matmul
        return jnp.dot(p_ref[...], h2, preferred_element_type=f32)

    g_t = branch(a0_t_ref, a1_t_ref, x_t_ref, p_t_ref, w1_t_ref, w2_t_ref, 0)
    g_p = branch(a0_p_ref, a1_p_ref, x_p_ref, p_p_ref, w1_p_ref, w2_p_ref, 6)

    # ---- fusion head: cat([g_t,g_p]) @ Wf == g_t @ Wf_top + g_p @ Wf_bot
    out = w2_t_ref.shape[1]
    y = jnp.maximum(
        jnp.dot(g_t, wf_ref[0:out, :], preferred_element_type=f32)
        + jnp.dot(g_p, wf_ref[out:2 * out, :], preferred_element_type=f32)
        + vrow(12, out),
        0.0)

    # ---- fc (zero-padded to 128 lanes) + masked log_softmax over real classes
    z_full = jnp.dot(y, wc_ref[...], preferred_element_type=f32) + V[13:14, :]
    col = jax.lax.broadcasted_iota(jnp.int32, z_full.shape, 1)
    valid = col < NUM_CLASSES
    z_m = jnp.where(valid, z_full, jnp.float32(-1e30))
    m = jnp.max(z_m, axis=1, keepdims=True)
    e = jnp.where(valid, jnp.exp(z_m - m), 0.0)
    s = jnp.sum(e, axis=1, keepdims=True)
    logp = jnp.where(valid, z_m - m - jnp.log(s), 0.0)

    # single lane-dense output store; wrapper slices the 2 real classes back out
    o_ref[...] = logp


# ---------------------- graph glue (plain JAX, inside jit) -------------------

def dense_rel_adj(edge_index, edge_type, rel, n):
    """Row-normalized dense adjacency for relation `rel` (PyG mean aggregation)."""
    src, dst = edge_index[0], edge_index[1]
    mask = (edge_type == rel).astype(jnp.float32)
    adj = jnp.zeros((n, n), jnp.float32).at[dst, src].add(mask)
    deg = adj.sum(axis=1, keepdims=True)
    return adj / jnp.maximum(deg, 1.0)


def pool_matrix(batch, num_graphs, n):
    p = jnp.zeros((num_graphs, n), jnp.float32).at[batch, jnp.arange(n)].add(1.0)
    cnt = p.sum(axis=1, keepdims=True)
    return p / jnp.maximum(cnt, 1.0)


# ------------------------------ wrapper --------------------------------------

def _pad_cols(x, mult=8):
    pad = (-x.shape[1]) % mult
    return jnp.pad(x, ((0, 0), (0, pad))) if pad else x


def _pad_rows(w, mult=8):
    pad = (-w.shape[0]) % mult
    return jnp.pad(w, ((0, pad), (0, 0))) if pad else w


def _stack_rows(conv):
    # [W0; W1; Wroot], each block zero-padded to 8-aligned row count so the
    # in-kernel static row slices are sublane-aligned.
    return jnp.concatenate(
        [_pad_rows(conv["w0"]), _pad_rows(conv["w1"]), _pad_rows(conv["wr"])], axis=0)


def _vec_row(v):
    v = jnp.asarray(v, jnp.float32).reshape(-1)
    return jnp.pad(v, (0, LANE - v.shape[0]))


@partial(jax.jit, static_argnames=("num_graphs",))
def _gcn_net_forward_impl(params,
                          x_t, edge_index_t, edge_type_t, x_t_batch,
                          x_p, edge_index_p, edge_type_p, x_p_batch,
                          num_graphs):
    n_t = x_t.shape[0]
    n_p = x_p.shape[0]
    B = num_graphs
    out_dim = params["t2"]["w0"].shape[1]

    # graph structure -> dense operators (fused with everything else under jit)
    a0_t = dense_rel_adj(edge_index_t, edge_type_t, 0, n_t)
    a1_t = dense_rel_adj(edge_index_t, edge_type_t, 1, n_t)
    a0_p = dense_rel_adj(edge_index_p, edge_type_p, 0, n_p)
    a1_p = dense_rel_adj(edge_index_p, edge_type_p, 1, n_p)
    p_t = pool_matrix(x_t_batch, B, n_t)
    p_p = pool_matrix(x_p_batch, B, n_p)

    # pad feature dim to a multiple of 8 (sublane alignment of weight slices)
    x_t_pad = _pad_cols(x_t)
    x_p_pad = _pad_cols(x_p)

    # row-stacked per-relation weights (one operand per RGCN layer)
    w1_t = _stack_rows(params["t1"])
    w2_t = _stack_rows(params["t2"])
    w1_p = _stack_rows(params["p1"])
    w2_p = _stack_rows(params["p2"])

    # fusion weight is already row-stacked [Wf_top; Wf_bot]
    wf = params["fusion_w"]

    # fc weights zero-padded to 128 lanes -> lane-dense output store
    wc_pad = jnp.zeros((out_dim, LANE), jnp.float32).at[:, :NUM_CLASSES].set(params["fc_w"])

    # pack all tiny (1,D) parameters into one (16,128) operand
    vec_rows = [
        params["t1"]["b"], params["t_bn1"]["gamma"], params["t_bn1"]["beta"],
        params["t2"]["b"], params["t_bn2"]["gamma"], params["t_bn2"]["beta"],
        params["p1"]["b"], params["p_bn1"]["gamma"], params["p_bn1"]["beta"],
        params["p2"]["b"], params["p_bn2"]["gamma"], params["p_bn2"]["beta"],
        params["fusion_b"], params["fc_b"],
    ]
    vecs = jnp.stack([_vec_row(r) for r in vec_rows], axis=0)
    vecs = jnp.pad(vecs, ((0, 16 - vecs.shape[0]), (0, 0)))

    out_padded = pl.pallas_call(
        gcn_net_kernel,
        out_shape=jax.ShapeDtypeStruct((B, LANE), jnp.float32),
    )(
        a0_t, a1_t, x_t_pad, p_t,
        a0_p, a1_p, x_p_pad, p_p,
        w1_t, w2_t, w1_p, w2_p,
        wf, wc_pad, vecs,
    )
    return out_padded[:, :NUM_CLASSES]


def gcn_net_forward(params, data):
    hid = params["t1"]["w0"].shape[1]
    out_dim = params["t2"]["w0"].shape[1]
    assert hid % 8 == 0 and out_dim % 8 == 0, "hid/out dims must be 8-aligned"
    return _gcn_net_forward_impl(
        params,
        data["x_t"], data["edge_index_t"], data["edge_type_t"], data["x_t_batch"],
        data["x_p"], data["edge_index_p"], data["edge_type_p"], data["x_p_batch"],
        num_graphs=data["num_graphs"],
    )


# ----------------------------- parameter init --------------------------------

def glorot(key, shape):
    fan_in, fan_out = shape
    lim = (6.0 / (fan_in + fan_out)) ** 0.5
    return jax.random.uniform(key, shape, jnp.float32, -lim, lim)


def make_params(key, in_dim_t, in_dim_p, hid_dim, out_dim):
    ks = iter(jax.random.split(key, 32))

    def rgcn_conv(d_in, d_out):
        return dict(
            w0=glorot(next(ks), (d_in, d_out)),
            w1=glorot(next(ks), (d_in, d_out)),
            wr=glorot(next(ks), (d_in, d_out)),
            b=jnp.zeros((1, d_out), jnp.float32),
        )

    def bn(d):
        return dict(gamma=jnp.ones((1, d), jnp.float32),
                    beta=jnp.zeros((1, d), jnp.float32))

    return dict(
        t1=rgcn_conv(in_dim_t, hid_dim), t_bn1=bn(hid_dim),
        t2=rgcn_conv(hid_dim, out_dim), t_bn2=bn(out_dim),
        p1=rgcn_conv(in_dim_p, hid_dim), p_bn1=bn(hid_dim),
        p2=rgcn_conv(hid_dim, out_dim), p_bn2=bn(out_dim),
        fusion_w=glorot(next(ks), (2 * out_dim, out_dim)),
        fusion_b=jnp.zeros((1, out_dim), jnp.float32),
        fc_w=glorot(next(ks), (out_dim, NUM_CLASSES)),
        fc_b=jnp.zeros((1, NUM_CLASSES), jnp.float32),
    )


# -------------------------- pure-JAX reference -------------------------------

def _ref_layer(a0, a1, x, c, bn):
    h = a0 @ x @ c["w0"] + a1 @ x @ c["w1"] + x @ c["wr"] + c["b"]
    mean = h.mean(axis=0, keepdims=True)
    var = ((h - mean) ** 2).mean(axis=0, keepdims=True)
    hn = (h - mean) / jnp.sqrt(var + 1e-5) * bn["gamma"] + bn["beta"]
    return jnp.where(hn >= 0, hn, 0.01 * hn)


def gcn_net_reference(params, data):
    n_t = data["x_t"].shape[0]
    n_p = data["x_p"].shape[0]
    B = data["num_graphs"]
    a0_t = dense_rel_adj(data["edge_index_t"], data["edge_type_t"], 0, n_t)
    a1_t = dense_rel_adj(data["edge_index_t"], data["edge_type_t"], 1, n_t)
    a0_p = dense_rel_adj(data["edge_index_p"], data["edge_type_p"], 0, n_p)
    a1_p = dense_rel_adj(data["edge_index_p"], data["edge_type_p"], 1, n_p)
    p_t = pool_matrix(data["x_t_batch"], B, n_t)
    p_p = pool_matrix(data["x_p_batch"], B, n_p)

    h_t = _ref_layer(a0_t, a1_t, data["x_t"], params["t1"], params["t_bn1"])
    h_t = _ref_layer(a0_t, a1_t, h_t, params["t2"], params["t_bn2"])
    g_t = p_t @ h_t
    h_p = _ref_layer(a0_p, a1_p, data["x_p"], params["p1"], params["p_bn1"])
    h_p = _ref_layer(a0_p, a1_p, h_p, params["p2"], params["p_bn2"])
    g_p = p_p @ h_p

    x = jnp.concatenate([g_t, g_p], axis=1)
    x = jnp.maximum(x @ params["fusion_w"] + params["fusion_b"], 0.0)
    z = x @ params["fc_w"] + params["fc_b"]
    return jax.nn.log_softmax(z, axis=1)


# --------------------------------- main ---------------------------------------

if __name__ == "__main__":
    key = jax.random.PRNGKey(0)
    k_param, k_xt, k_xp, k_et, k_ep, k_tt, k_tp = jax.random.split(key, 7)

    in_dim_t, in_dim_p, hid_dim, out_dim = 16, 12, 32, 16
    n_t, n_p, e_t, e_p, num_graphs = 24, 20, 48, 40, 2

    params = make_params(k_param, in_dim_t, in_dim_p, hid_dim, out_dim)

    data = dict(
        x_t=jax.random.normal(k_xt, (n_t, in_dim_t), jnp.float32),
        edge_index_t=jax.random.randint(k_et, (2, e_t), 0, n_t),
        edge_type_t=jax.random.randint(k_tt, (e_t,), 0, 2),
        x_t_batch=jnp.concatenate([jnp.zeros(n_t // 2, jnp.int32),
                                   jnp.ones(n_t - n_t // 2, jnp.int32)]),
        x_p=jax.random.normal(k_xp, (n_p, in_dim_p), jnp.float32),
        edge_index_p=jax.random.randint(k_ep, (2, e_p), 0, n_p),
        edge_type_p=jax.random.randint(k_tp, (e_p,), 0, 2),
        x_p_batch=jnp.concatenate([jnp.zeros(n_p // 2, jnp.int32),
                                   jnp.ones(n_p - n_p // 2, jnp.int32)]),
        num_graphs=num_graphs,
    )

    out = gcn_net_forward(params, data)
    out = jax.block_until_ready(out)

    ref = gcn_net_reference(params, data)
    assert out.shape == (num_graphs, NUM_CLASSES), out.shape
    assert jnp.allclose(out, ref, atol=2e-3, rtol=2e-3), (out, ref)

    print("KERNEL_OK")
</pallas_src>

<mosaic_0001>
module attributes {stable_mosaic.version = 11 : i64} {
  func.func private @main(%arg0: i32) attributes {dimension_semantics = [#tpu.dimension_semantics<core_parallel>], iteration_bounds = array<i64: 2>, tpu.core_type = #tpu.core_type<sc_scalar_subcore>, window_params = []} {
    return
  }
}

module attributes {stable_mosaic.version = 11 : i64} {
  func.func private @main(%arg0: i32) attributes {dimension_semantics = [#tpu.dimension_semantics<core_parallel>], iteration_bounds = array<i64: 2>, tpu.core_type = #tpu.core_type<sc_scalar_subcore>, window_params = []} {
    return
  }
}

module attributes {stable_mosaic.version = 11 : i64} {
  func.func @gcn_net_kernel(%arg0: memref<24x24xf32, #tpu.memory_space<vmem>>, %arg1: memref<24x24xf32, #tpu.memory_space<vmem>>, %arg2: memref<24x16xf32, #tpu.memory_space<vmem>>, %arg3: memref<2x24xf32, #tpu.memory_space<vmem>>, %arg4: memref<20x20xf32, #tpu.memory_space<vmem>>, %arg5: memref<20x20xf32, #tpu.memory_space<vmem>>, %arg6: memref<20x16xf32, #tpu.memory_space<vmem>>, %arg7: memref<2x20xf32, #tpu.memory_space<vmem>>, %arg8: memref<48x32xf32, #tpu.memory_space<vmem>>, %arg9: memref<96x16xf32, #tpu.memory_space<vmem>>, %arg10: memref<48x32xf32, #tpu.memory_space<vmem>>, %arg11: memref<96x16xf32, #tpu.memory_space<vmem>>, %arg12: memref<32x16xf32, #tpu.memory_space<vmem>>, %arg13: memref<16x128xf32, #tpu.memory_space<vmem>>, %arg14: memref<16x128xf32, #tpu.memory_space<vmem>>, %arg15: memref<2x128xf32, #tpu.memory_space<vmem>>) attributes {dimension_semantics = [], scalar_prefetch = 0 : i64, scratch_operands = 0 : i64, tpu.core_type = #tpu.core_type<tc>} {
    %c0 = arith.constant 0 : index
    %c0_0 = arith.constant 0 : index
    %0 = vector.load %arg14[%c0, %c0_0] : memref<16x128xf32, #tpu.memory_space<vmem>>, vector<16x128xf32>
    %c0_1 = arith.constant 0 : index
    %c0_2 = arith.constant 0 : index
    %1 = vector.load %arg0[%c0_1, %c0_2] : memref<24x24xf32, #tpu.memory_space<vmem>>, vector<24x24xf32>
    %c0_3 = arith.constant 0 : index
    %c0_4 = arith.constant 0 : index
    %2 = vector.load %arg1[%c0_3, %c0_4] : memref<24x24xf32, #tpu.memory_space<vmem>>, vector<24x24xf32>
    %c0_5 = arith.constant 0 : index
    %c0_6 = arith.constant 0 : index
    %3 = vector.load %arg2[%c0_5, %c0_6] : memref<24x16xf32, #tpu.memory_space<vmem>>, vector<24x16xf32>
    %cst = arith.constant dense<0.000000e+00> : vector<24x16xf32>
    %4 = tpu.matmul %1, %3, %cst {dimension_numbers = #tpu.dot_dimension_numbers<[1], [0], [0], [1], [0, 0, 1, 1], [], []>} : vector<24x24xf32>, vector<24x16xf32>, vector<24x16xf32> -> vector<24x16xf32>
    %cst_7 = arith.constant dense<0.000000e+00> : vector<24x16xf32>
    %5 = tpu.matmul %2, %3, %cst_7 {dimension_numbers = #tpu.dot_dimension_numbers<[1], [0], [0], [1], [0, 0, 1, 1], [], []>} : vector<24x24xf32>, vector<24x16xf32>, vector<24x16xf32> -> vector<24x16xf32>
    %c0_8 = arith.constant 0 : index
    %c0_9 = arith.constant 0 : index
    %6 = vector.load %arg8[%c0_8, %c0_9] : memref<48x32xf32, #tpu.memory_space<vmem>>, vector<16x32xf32>
    %cst_10 = arith.constant dense<0.000000e+00> : vector<24x32xf32>
    %7 = tpu.matmul %4, %6, %cst_10 {dimension_numbers = #tpu.dot_dimension_numbers<[1], [0], [0], [1], [0, 0, 1, 1], [], []>} : vector<24x16xf32>, vector<16x32xf32>, vector<24x32xf32> -> vector<24x32xf32>
    %c16 = arith.constant 16 : index
    %c0_11 = arith.constant 0 : index
    %8 = vector.load %arg8[%c16, %c0_11] : memref<48x32xf32, #tpu.memory_space<vmem>>, vector<16x32xf32>
    %cst_12 = arith.constant dense<0.000000e+00> : vector<24x32xf32>
    %9 = tpu.matmul %5, %8, %cst_12 {dimension_numbers = #tpu.dot_dimension_numbers<[1], [0], [0], [1], [0, 0, 1, 1], [], []>} : vector<24x16xf32>, vector<16x32xf32>, vector<24x32xf32> -> vector<24x32xf32>
    %10 = arith.addf %7, %9 : vector<24x32xf32>
    %c32 = arith.constant 32 : index
    %c0_13 = arith.constant 0 : index
    %11 = vector.load %arg8[%c32, %c0_13] : memref<48x32xf32, #tpu.memory_space<vmem>>, vector<16x32xf32>
    %cst_14 = arith.constant dense<0.000000e+00> : vector<24x32xf32>
    %12 = tpu.matmul %3, %11, %cst_14 {dimension_numbers = #tpu.dot_dimension_numbers<[1], [0], [0], [1], [0, 0, 1, 1], [], []>} : vector<24x16xf32>, vector<16x32xf32>, vector<24x32xf32> -> vector<24x32xf32>
    %13 = arith.addf %10, %12 : vector<24x32xf32>
    %14 = vector.extract_strided_slice %0 {offsets = [0, 0], sizes = [1, 32], strides = [1, 1]} : vector<16x128xf32> to vector<1x32xf32>
    %15 = vector.broadcast %14 : vector<1x32xf32> to vector<24x32xf32>
    %16 = arith.addf %13, %15 : vector<24x32xf32>
    %17 = vector.extract_strided_slice %0 {offsets = [1, 0], sizes = [1, 32], strides = [1, 1]} : vector<16x128xf32> to vector<1x32xf32>
    %18 = vector.extract_strided_slice %0 {offsets = [2, 0], sizes = [1, 32], strides = [1, 1]} : vector<16x128xf32> to vector<1x32xf32>
    %cst_15 = arith.constant dense<0.000000e+00> : vector<32xf32>
    %19 = vector.multi_reduction <add>, %16, %cst_15 [0] : vector<24x32xf32> to vector<32xf32>
    %20 = vector.shape_cast %19 : vector<32xf32> to vector<1x32xf32>
    %cst_16 = arith.constant 2.400000e+01 : f32
    %21 = vector.broadcast %cst_16 : f32 to vector<1x32xf32>
    %22 = arith.divf %20, %21 : vector<1x32xf32>
    %23 = vector.broadcast %22 : vector<1x32xf32> to vector<24x32xf32>
    %24 = arith.subf %16, %23 : vector<24x32xf32>
    %25 = arith.mulf %24, %24 : vector<24x32xf32>
    %cst_17 = arith.constant dense<0.000000e+00> : vector<32xf32>
    %26 = vector.multi_reduction <add>, %25, %cst_17 [0] : vector<24x32xf32> to vector<32xf32>
    %27 = vector.shape_cast %26 : vector<32xf32> to vector<1x32xf32>
    %cst_18 = arith.constant 2.400000e+01 : f32
    %28 = vector.broadcast %cst_18 : f32 to vector<1x32xf32>
    %29 = arith.divf %27, %28 : vector<1x32xf32>
    %30 = vector.broadcast %22 : vector<1x32xf32> to vector<24x32xf32>
    %31 = arith.subf %16, %30 : vector<24x32xf32>
    %cst_19 = arith.constant 9.99999974E-6 : f32
    %32 = vector.broadcast %cst_19 : f32 to vector<1x32xf32>
    %33 = arith.addf %29, %32 : vector<1x32xf32>
    %34 = math.rsqrt %33 : vector<1x32xf32>
    %35 = vector.broadcast %34 : vector<1x32xf32> to vector<24x32xf32>
    %36 = arith.mulf %31, %35 : vector<24x32xf32>
    %37 = vector.broadcast %17 : vector<1x32xf32> to vector<24x32xf32>
    %38 = arith.mulf %36, %37 : vector<24x32xf32>
    %39 = vector.broadcast %18 : vector<1x32xf32> to vector<24x32xf32>
    %40 = arith.addf %38, %39 : vector<24x32xf32>
    %cst_20 = arith.constant 0.000000e+00 : f32
    %41 = vector.broadcast %cst_20 : f32 to vector<24x32xf32>
    %42 = arith.cmpf oge, %40, %41 : vector<24x32xf32>
    %cst_21 = arith.constant 0.00999999977 : f32
    %43 = vector.broadcast %cst_21 : f32 to vector<24x32xf32>
    %44 = arith.mulf %43, %40 : vector<24x32xf32>
    %45 = arith.select %42, %40, %44 : vector<24x32xi1>, vector<24x32xf32>
    %c0_22 = arith.constant 0 : index
    %c0_23 = arith.constant 0 : index
    %46 = vector.load %arg9[%c0_22, %c0_23] : memref<96x16xf32, #tpu.memory_space<vmem>>, vector<32x16xf32>
    %cst_24 = arith.constant dense<0.000000e+00> : vector<24x16xf32>
    %47 = tpu.matmul %45, %46, %cst_24 {dimension_numbers = #tpu.dot_dimension_numbers<[1], [0], [0], [1], [0, 0, 1, 1], [], []>} : vector<24x32xf32>, vector<32x16xf32>, vector<24x16xf32> -> vector<24x16xf32>
    %c32_25 = arith.constant 32 : index
    %c0_26 = arith.constant 0 : index
    %48 = vector.load %arg9[%c32_25, %c0_26] : memref<96x16xf32, #tpu.memory_space<vmem>>, vector<32x16xf32>
    %cst_27 = arith.constant dense<0.000000e+00> : vector<24x16xf32>
    %49 = tpu.matmul %45, %48, %cst_27 {dimension_numbers = #tpu.dot_dimension_numbers<[1], [0], [0], [1], [0, 0, 1, 1], [], []>} : vector<24x32xf32>, vector<32x16xf32>, vector<24x16xf32> -> vector<24x16xf32>
    %c64 = arith.constant 64 : index
    %c0_28 = arith.constant 0 : index
    %50 = vector.load %arg9[%c64, %c0_28] : memref<96x16xf32, #tpu.memory_space<vmem>>, vector<32x16xf32>
    %cst_29 = arith.constant dense<0.000000e+00> : vector<24x16xf32>
    %51 = tpu.matmul %45, %50, %cst_29 {dimension_numbers = #tpu.dot_dimension_numbers<[1], [0], [0], [1], [0, 0, 1, 1], [], []>} : vector<24x32xf32>, vector<32x16xf32>, vector<24x16xf32> -> vector<24x16xf32>
    %cst_30 = arith.constant dense<0.000000e+00> : vector<24x16xf32>
    %52 = tpu.matmul %1, %47, %cst_30 {dimension_numbers = #tpu.dot_dimension_numbers<[1], [0], [0], [1], [0, 0, 1, 1], [], []>} : vector<24x24xf32>, vector<24x16xf32>, vector<24x16xf32> -> vector<24x16xf32>
    %cst_31 = arith.constant dense<0.000000e+00> : vector<24x16xf32>
    %53 = tpu.matmul %2, %49, %cst_31 {dimension_numbers = #tpu.dot_dimension_numbers<[1], [0], [0], [1], [0, 0, 1, 1], [], []>} : vector<24x24xf32>, vector<24x16xf32>, vector<24x16xf32> -> vector<24x16xf32>
    %54 = arith.addf %52, %53 : vector<24x16xf32>
    %55 = arith.addf %54, %51 : vector<24x16xf32>
    %56 = vector.extract_strided_slice %0 {offsets = [3, 0], sizes = [1, 16], strides = [1, 1]} : vector<16x128xf32> to vector<1x16xf32>
    %57 = vector.broadcast %56 : vector<1x16xf32> to vector<24x16xf32>
    %58 = arith.addf %55, %57 : vector<24x16xf32>
    %59 = vector.extract_strided_slice %0 {offsets = [4, 0], sizes = [1, 16], strides = [1, 1]} : vector<16x128xf32> to vector<1x16xf32>
    %60 = vector.extract_strided_slice %0 {offsets = [5, 0], sizes = [1, 16], strides = [1, 1]} : vector<16x128xf32> to vector<1x16xf32>
    %cst_32 = arith.constant dense<0.000000e+00> : vector<16xf32>
    %61 = vector.multi_reduction <add>, %58, %cst_32 [0] : vector<24x16xf32> to vector<16xf32>
    %62 = vector.shape_cast %61 : vector<16xf32> to vector<1x16xf32>
    %cst_33 = arith.constant 2.400000e+01 : f32
    %63 = vector.broadcast %cst_33 : f32 to vector<1x16xf32>
    %64 = arith.divf %62, %63 : vector<1x16xf32>
    %65 = vector.broadcast %64 : vector<1x16xf32> to vector<24x16xf32>
    %66 = arith.subf %58, %65 : vector<24x16xf32>
    %67 = arith.mulf %66, %66 : vector<24x16xf32>
    %cst_34 = arith.constant dense<0.000000e+00> : vector<16xf32>
    %68 = vector.multi_reduction <add>, %67, %cst_34 [0] : vector<24x16xf32> to vector<16xf32>
    %69 = vector.shape_cast %68 : vector<16xf32> to vector<1x16xf32>
    %cst_35 = arith.constant 2.400000e+01 : f32
    %70 = vector.broadcast %cst_35 : f32 to vector<1x16xf32>
    %71 = arith.divf %69, %70 : vector<1x16xf32>
    %72 = vector.broadcast %64 : vector<1x16xf32> to vector<24x16xf32>
    %73 = arith.subf %58, %72 : vector<24x16xf32>
    %cst_36 = arith.constant 9.99999974E-6 : f32
    %74 = vector.broadcast %cst_36 : f32 to vector<1x16xf32>
    %75 = arith.addf %71, %74 : vector<1x16xf32>
    %76 = math.rsqrt %75 : vector<1x16xf32>
    %77 = vector.broadcast %76 : vector<1x16xf32> to vector<24x16xf32>
    %78 = arith.mulf %73, %77 : vector<24x16xf32>
    %79 = vector.broadcast %59 : vector<1x16xf32> to vector<24x16xf32>
    %80 = arith.mulf %78, %79 : vector<24x16xf32>
    %81 = vector.broadcast %60 : vector<1x16xf32> to vector<24x16xf32>
    %82 = arith.addf %80, %81 : vector<24x16xf32>
    %cst_37 = arith.constant 0.000000e+00 : f32
    %83 = vector.broadcast %cst_37 : f32 to vector<24x16xf32>
    %84 = arith.cmpf oge, %82, %83 : vector<24x16xf32>
    %cst_38 = arith.constant 0.00999999977 : f32
    %85 = vector.broadcast %cst_38 : f32 to vector<24x16xf32>
    %86 = arith.mulf %85, %82 : vector<24x16xf32>
    %87 = arith.select %84, %82, %86 : vector<24x16xi1>, vector<24x16xf32>
    %c0_39 = arith.constant 0 : index
    %c0_40 = arith.constant 0 : index
    %88 = vector.load %arg3[%c0_39, %c0_40] : memref<2x24xf32, #tpu.memory_space<vmem>>, vector<2x24xf32>
    %cst_41 = arith.constant dense<0.000000e+00> : vector<2x16xf32>
    %89 = tpu.matmul %88, %87, %cst_41 {dimension_numbers = #tpu.dot_dimension_numbers<[1], [0], [0], [1], [0, 0, 1, 1], [], []>} : vector<2x24xf32>, vector<24x16xf32>, vector<2x16xf32> -> vector<2x16xf32>
    %c0_42 = arith.constant 0 : index
    %c0_43 = arith.constant 0 : index
    %90 = vector.load %arg4[%c0_42, %c0_43] : memref<20x20xf32, #tpu.memory_space<vmem>>, vector<20x20xf32>
    %c0_44 = arith.constant 0 : index
    %c0_45 = arith.constant 0 : index
    %91 = vector.load %arg5[%c0_44, %c0_45] : memref<20x20xf32, #tpu.memory_space<vmem>>, vector<20x20xf32>
    %c0_46 = arith.constant 0 : index
    %c0_47 = arith.constant 0 : index
    %92 = vector.load %arg6[%c0_46, %c0_47] : memref<20x16xf32, #tpu.memory_space<vmem>>, vector<20x16xf32>
    %cst_48 = arith.constant dense<0.000000e+00> : vector<20x16xf32>
    %93 = tpu.matmul %90, %92, %cst_48 {dimension_numbers = #tpu.dot_dimension_numbers<[1], [0], [0], [1], [0, 0, 1, 1], [], []>} : vector<20x20xf32>, vector<20x16xf32>, vector<20x16xf32> -> vector<20x16xf32>
    %cst_49 = arith.constant dense<0.000000e+00> : vector<20x16xf32>
    %94 = tpu.matmul %91, %92, %cst_49 {dimension_numbers = #tpu.dot_dimension_numbers<[1], [0], [0], [1], [0, 0, 1, 1], [], []>} : vector<20x20xf32>, vector<20x16xf32>, vector<20x16xf32> -> vector<20x16xf32>
    %c0_50 = arith.constant 0 : index
    %c0_51 = arith.constant 0 : index
    %95 = vector.load %arg10[%c0_50, %c0_51] : memref<48x32xf32, #tpu.memory_space<vmem>>, vector<16x32xf32>
    %cst_52 = arith.constant dense<0.000000e+00> : vector<20x32xf32>
    %96 = tpu.matmul %93, %95, %cst_52 {dimension_numbers = #tpu.dot_dimension_numbers<[1], [0], [0], [1], [0, 0, 1, 1], [], []>} : vector<20x16xf32>, vector<16x32xf32>, vector<20x32xf32> -> vector<20x32xf32>
    %c16_53 = arith.constant 16 : index
    %c0_54 = arith.constant 0 : index
    %97 = vector.load %arg10[%c16_53, %c0_54] : memref<48x32xf32, #tpu.memory_space<vmem>>, vector<16x32xf32>
    %cst_55 = arith.constant dense<0.000000e+00> : vector<20x32xf32>
    %98 = tpu.matmul %94, %97, %cst_55 {dimension_numbers = #tpu.dot_dimension_numbers<[1], [0], [0], [1], [0, 0, 1, 1], [], []>} : vector<20x16xf32>, vector<16x32xf32>, vector<20x32xf32> -> vector<20x32xf32>
    %99 = arith.addf %96, %98 : vector<20x32xf32>
    %c32_56 = arith.constant 32 : index
    %c0_57 = arith.constant 0 : index
    %100 = vector.load %arg10[%c32_56, %c0_57] : memref<48x32xf32, #tpu.memory_space<vmem>>, vector<16x32xf32>
    %cst_58 = arith.constant dense<0.000000e+00> : vector<20x32xf32>
    %101 = tpu.matmul %92, %100, %cst_58 {dimension_numbers = #tpu.dot_dimension_numbers<[1], [0], [0], [1], [0, 0, 1, 1], [], []>} : vector<20x16xf32>, vector<16x32xf32>, vector<20x32xf32> -> vector<20x32xf32>
    %102 = arith.addf %99, %101 : vector<20x32xf32>
    %103 = vector.extract_strided_slice %0 {offsets = [6, 0], sizes = [1, 32], strides = [1, 1]} : vector<16x128xf32> to vector<1x32xf32>
    %104 = vector.broadcast %103 : vector<1x32xf32> to vector<20x32xf32>
    %105 = arith.addf %102, %104 : vector<20x32xf32>
    %106 = vector.extract_strided_slice %0 {offsets = [7, 0], sizes = [1, 32], strides = [1, 1]} : vector<16x128xf32> to vector<1x32xf32>
    %107 = vector.extract_strided_slice %0 {offsets = [8, 0], sizes = [1, 32], strides = [1, 1]} : vector<16x128xf32> to vector<1x32xf32>
    %cst_59 = arith.constant dense<0.000000e+00> : vector<32xf32>
    %108 = vector.multi_reduction <add>, %105, %cst_59 [0] : vector<20x32xf32> to vector<32xf32>
    %109 = vector.shape_cast %108 : vector<32xf32> to vector<1x32xf32>
    %cst_60 = arith.constant 2.000000e+01 : f32
    %110 = vector.broadcast %cst_60 : f32 to vector<1x32xf32>
    %111 = arith.divf %109, %110 : vector<1x32xf32>
    %112 = vector.broadcast %111 : vector<1x32xf32> to vector<20x32xf32>
    %113 = arith.subf %105, %112 : vector<20x32xf32>
    %114 = arith.mulf %113, %113 : vector<20x32xf32>
    %cst_61 = arith.constant dense<0.000000e+00> : vector<32xf32>
    %115 = vector.multi_reduction <add>, %114, %cst_61 [0] : vector<20x32xf32> to vector<32xf32>
    %116 = vector.shape_cast %115 : vector<32xf32> to vector<1x32xf32>
    %cst_62 = arith.constant 2.000000e+01 : f32
    %117 = vector.broadcast %cst_62 : f32 to vector<1x32xf32>
    %118 = arith.divf %116, %117 : vector<1x32xf32>
    %119 = vector.broadcast %111 : vector<1x32xf32> to vector<20x32xf32>
    %120 = arith.subf %105, %119 : vector<20x32xf32>
    %cst_63 = arith.constant 9.99999974E-6 : f32
    %121 = vector.broadcast %cst_63 : f32 to vector<1x32xf32>
    %122 = arith.addf %118, %121 : vector<1x32xf32>
    %123 = math.rsqrt %122 : vector<1x32xf32>
    %124 = vector.broadcast %123 : vector<1x32xf32> to vector<20x32xf32>
    %125 = arith.mulf %120, %124 : vector<20x32xf32>
    %126 = vector.broadcast %106 : vector<1x32xf32> to vector<20x32xf32>
    %127 = arith.mulf %125, %126 : vector<20x32xf32>
    %128 = vector.broadcast %107 : vector<1x32xf32> to vector<20x32xf32>
    %129 = arith.addf %127, %128 : vector<20x32xf32>
    %cst_64 = arith.constant 0.000000e+00 : f32
    %130 = vector.broadcast %cst_64 : f32 to vector<20x32xf32>
    %131 = arith.cmpf oge, %129, %130 : vector<20x32xf32>
    %cst_65 = arith.constant 0.00999999977 : f32
    %132 = vector.broadcast %cst_65 : f32 to vector<20x32xf32>
    %133 = arith.mulf %132, %129 : vector<20x32xf32>
    %134 = arith.select %131, %129, %133 : vector<20x32xi1>, vector<20x32xf32>
    %c0_66 = arith.constant 0 : index
    %c0_67 = arith.constant 0 : index
    %135 = vector.load %arg11[%c0_66, %c0_67] : memref<96x16xf32, #tpu.memory_space<vmem>>, vector<32x16xf32>
    %cst_68 = arith.constant dense<0.000000e+00> : vector<20x16xf32>
    %136 = tpu.matmul %134, %135, %cst_68 {dimension_numbers = #tpu.dot_dimension_numbers<[1], [0], [0], [1], [0, 0, 1, 1], [], []>} : vector<20x32xf32>, vector<32x16xf32>, vector<20x16xf32> -> vector<20x16xf32>
    %c32_69 = arith.constant 32 : index
    %c0_70 = arith.constant 0 : index
    %137 = vector.load %arg11[%c32_69, %c0_70] : memref<96x16xf32, #tpu.memory_space<vmem>>, vector<32x16xf32>
    %cst_71 = arith.constant dense<0.000000e+00> : vector<20x16xf32>
    %138 = tpu.matmul %134, %137, %cst_71 {dimension_numbers = #tpu.dot_dimension_numbers<[1], [0], [0], [1], [0, 0, 1, 1], [], []>} : vector<20x32xf32>, vector<32x16xf32>, vector<20x16xf32> -> vector<20x16xf32>
    %c64_72 = arith.constant 64 : index
    %c0_73 = arith.constant 0 : index
    %139 = vector.load %arg11[%c64_72, %c0_73] : memref<96x16xf32, #tpu.memory_space<vmem>>, vector<32x16xf32>
    %cst_74 = arith.constant dense<0.000000e+00> : vector<20x16xf32>
    %140 = tpu.matmul %134, %139, %cst_74 {dimension_numbers = #tpu.dot_dimension_numbers<[1], [0], [0], [1], [0, 0, 1, 1], [], []>} : vector<20x32xf32>, vector<32x16xf32>, vector<20x16xf32> -> vector<20x16xf32>
    %cst_75 = arith.constant dense<0.000000e+00> : vector<20x16xf32>
    %141 = tpu.matmul %90, %136, %cst_75 {dimension_numbers = #tpu.dot_dimension_numbers<[1], [0], [0], [1], [0, 0, 1, 1], [], []>} : vector<20x20xf32>, vector<20x16xf32>, vector<20x16xf32> -> vector<20x16xf32>
    %cst_76 = arith.constant dense<0.000000e+00> : vector<20x16xf32>
    %142 = tpu.matmul %91, %138, %cst_76 {dimension_numbers = #tpu.dot_dimension_numbers<[1], [0], [0], [1], [0, 0, 1, 1], [], []>} : vector<20x20xf32>, vector<20x16xf32>, vector<20x16xf32> -> vector<20x16xf32>
    %143 = arith.addf %141, %142 : vector<20x16xf32>
    %144 = arith.addf %143, %140 : vector<20x16xf32>
    %145 = vector.extract_strided_slice %0 {offsets = [9, 0], sizes = [1, 16], strides = [1, 1]} : vector<16x128xf32> to vector<1x16xf32>
    %146 = vector.broadcast %145 : vector<1x16xf32> to vector<20x16xf32>
    %147 = arith.addf %144, %146 : vector<20x16xf32>
    %148 = vector.extract_strided_slice %0 {offsets = [10, 0], sizes = [1, 16], strides = [1, 1]} : vector<16x128xf32> to vector<1x16xf32>
    %149 = vector.extract_strided_slice %0 {offsets = [11, 0], sizes = [1, 16], strides = [1, 1]} : vector<16x128xf32> to vector<1x16xf32>
    %cst_77 = arith.constant dense<0.000000e+00> : vector<16xf32>
    %150 = vector.multi_reduction <add>, %147, %cst_77 [0] : vector<20x16xf32> to vector<16xf32>
    %151 = vector.shape_cast %150 : vector<16xf32> to vector<1x16xf32>
    %cst_78 = arith.constant 2.000000e+01 : f32
    %152 = vector.broadcast %cst_78 : f32 to vector<1x16xf32>
    %153 = arith.divf %151, %152 : vector<1x16xf32>
    %154 = vector.broadcast %153 : vector<1x16xf32> to vector<20x16xf32>
    %155 = arith.subf %147, %154 : vector<20x16xf32>
    %156 = arith.mulf %155, %155 : vector<20x16xf32>
    %cst_79 = arith.constant dense<0.000000e+00> : vector<16xf32>
    %157 = vector.multi_reduction <add>, %156, %cst_79 [0] : vector<20x16xf32> to vector<16xf32>
    %158 = vector.shape_cast %157 : vector<16xf32> to vector<1x16xf32>
    %cst_80 = arith.constant 2.000000e+01 : f32
    %159 = vector.broadcast %cst_80 : f32 to vector<1x16xf32>
    %160 = arith.divf %158, %159 : vector<1x16xf32>
    %161 = vector.broadcast %153 : vector<1x16xf32> to vector<20x16xf32>
    %162 = arith.subf %147, %161 : vector<20x16xf32>
    %cst_81 = arith.constant 9.99999974E-6 : f32
    %163 = vector.broadcast %cst_81 : f32 to vector<1x16xf32>
    %164 = arith.addf %160, %163 : vector<1x16xf32>
    %165 = math.rsqrt %164 : vector<1x16xf32>
    %166 = vector.broadcast %165 : vector<1x16xf32> to vector<20x16xf32>
    %167 = arith.mulf %162, %166 : vector<20x16xf32>
    %168 = vector.broadcast %148 : vector<1x16xf32> to vector<20x16xf32>
    %169 = arith.mulf %167, %168 : vector<20x16xf32>
    %170 = vector.broadcast %149 : vector<1x16xf32> to vector<20x16xf32>
    %171 = arith.addf %169, %170 : vector<20x16xf32>
    %cst_82 = arith.constant 0.000000e+00 : f32
    %172 = vector.broadcast %cst_82 : f32 to vector<20x16xf32>
    %173 = arith.cmpf oge, %171, %172 : vector<20x16xf32>
    %cst_83 = arith.constant 0.00999999977 : f32
    %174 = vector.broadcast %cst_83 : f32 to vector<20x16xf32>
    %175 = arith.mulf %174, %171 : vector<20x16xf32>
    %176 = arith.select %173, %171, %175 : vector<20x16xi1>, vector<20x16xf32>
    %c0_84 = arith.constant 0 : index
    %c0_85 = arith.constant 0 : index
    %177 = vector.load %arg7[%c0_84, %c0_85] : memref<2x20xf32, #tpu.memory_space<vmem>>, vector<2x20xf32>
    %cst_86 = arith.constant dense<0.000000e+00> : vector<2x16xf32>
    %178 = tpu.matmul %177, %176, %cst_86 {dimension_numbers = #tpu.dot_dimension_numbers<[1], [0], [0], [1], [0, 0, 1, 1], [], []>} : vector<2x20xf32>, vector<20x16xf32>, vector<2x16xf32> -> vector<2x16xf32>
    %c0_87 = arith.constant 0 : index
    %c0_88 = arith.constant 0 : index
    %179 = vector.load %arg12[%c0_87, %c0_88] : memref<32x16xf32, #tpu.memory_space<vmem>>, vector<16x16xf32>
    %cst_89 = arith.constant dense<0.000000e+00> : vector<2x16xf32>
    %180 = tpu.matmul %89, %179, %cst_89 {dimension_numbers = #tpu.dot_dimension_numbers<[1], [0], [0], [1], [0, 0, 1, 1], [], []>} : vector<2x16xf32>, vector<16x16xf32>, vector<2x16xf32> -> vector<2x16xf32>
    %c16_90 = arith.constant 16 : index
    %c0_91 = arith.constant 0 : index
    %181 = vector.load %arg12[%c16_90, %c0_91] : memref<32x16xf32, #tpu.memory_space<vmem>>, vector<16x16xf32>
    %cst_92 = arith.constant dense<0.000000e+00> : vector<2x16xf32>
    %182 = tpu.matmul %178, %181, %cst_92 {dimension_numbers = #tpu.dot_dimension_numbers<[1], [0], [0], [1], [0, 0, 1, 1], [], []>} : vector<2x16xf32>, vector<16x16xf32>, vector<2x16xf32> -> vector<2x16xf32>
    %183 = arith.addf %180, %182 : vector<2x16xf32>
    %184 = vector.extract_strided_slice %0 {offsets = [12, 0], sizes = [1, 16], strides = [1, 1]} : vector<16x128xf32> to vector<1x16xf32>
    %185 = vector.broadcast %184 : vector<1x16xf32> to vector<2x16xf32>
    %186 = arith.addf %183, %185 : vector<2x16xf32>
    %cst_93 = arith.constant 0.000000e+00 : f32
    %187 = vector.broadcast %cst_93 : f32 to vector<2x16xf32>
    %188 = arith.maximumf %186, %187 : vector<2x16xf32>
    %c0_94 = arith.constant 0 : index
    %c0_95 = arith.constant 0 : index
    %189 = vector.load %arg13[%c0_94, %c0_95] : memref<16x128xf32, #tpu.memory_space<vmem>>, vector<16x128xf32>
    %cst_96 = arith.constant dense<0.000000e+00> : vector<2x128xf32>
    %190 = tpu.matmul %188, %189, %cst_96 {dimension_numbers = #tpu.dot_dimension_numbers<[1], [0], [0], [1], [0, 0, 1, 1], [], []>} : vector<2x16xf32>, vector<16x128xf32>, vector<2x128xf32> -> vector<2x128xf32>
    %191 = vector.extract_strided_slice %0 {offsets = [13, 0], sizes = [1, 128], strides = [1, 1]} : vector<16x128xf32> to vector<1x128xf32>
    %192 = vector.broadcast %191 : vector<1x128xf32> to vector<2x128xf32>
    %193 = arith.addf %190, %192 : vector<2x128xf32>
    %194 = tpu.iota {dimensions = array<i32: 1>} : vector<2x128xi32>
    %c2_i32 = arith.constant 2 : i32
    %195 = vector.broadcast %c2_i32 : i32 to vector<2x128xi32>
    %196 = arith.cmpi slt, %194, %195 : vector<2x128xi32>
    %cst_97 = arith.constant -1.000000e+30 : f32
    %197 = vector.broadcast %cst_97 : f32 to vector<2x128xf32>
    %198 = arith.select %196, %193, %197 : vector<2x128xi1>, vector<2x128xf32>
    %cst_98 = arith.constant dense<0xFF800000> : vector<2xf32>
    %199 = vector.multi_reduction <maximumf>, %198, %cst_98 [1] : vector<2x128xf32> to vector<2xf32>
    %200 = vector.shape_cast %199 : vector<2xf32> to vector<2x1xf32>
    %201 = vector.broadcast %200 : vector<2x1xf32> to vector<2x128xf32>
    %202 = arith.subf %198, %201 : vector<2x128xf32>
    %203 = math.exp %202 : vector<2x128xf32>
    %cst_99 = arith.constant 0.000000e+00 : f32
    %204 = vector.broadcast %cst_99 : f32 to vector<2x128xf32>
    %205 = arith.select %196, %203, %204 : vector<2x128xi1>, vector<2x128xf32>
    %cst_100 = arith.constant dense<0.000000e+00> : vector<2xf32>
    %206 = vector.multi_reduction <add>, %205, %cst_100 [1] : vector<2x128xf32> to vector<2xf32>
    %207 = vector.shape_cast %206 : vector<2xf32> to vector<2x1xf32>
    %208 = vector.broadcast %200 : vector<2x1xf32> to vector<2x128xf32>
    %209 = arith.subf %198, %208 : vector<2x128xf32>
    %210 = math.log %207 : vector<2x1xf32>
    %211 = vector.broadcast %210 : vector<2x1xf32> to vector<2x128xf32>
    %212 = arith.subf %209, %211 : vector<2x128xf32>
    %cst_101 = arith.constant 0.000000e+00 : f32
    %213 = vector.broadcast %cst_101 : f32 to vector<2x128xf32>
    %214 = arith.select %196, %212, %213 : vector<2x128xi1>, vector<2x128xf32>
    %c0_102 = arith.constant 0 : index
    %c0_103 = arith.constant 0 : index
    %215 = vector.load %arg15[%c0_102, %c0_103] : memref<2x128xf32, #tpu.memory_space<vmem>>, vector<2x128xf32>
    tpu.vector_store %arg15[%c0_102, %c0_103], %214 {strides = array<i32>} : memref<2x128xf32, #tpu.memory_space<vmem>>, vector<2x128xf32>,
    return
  }
}

</mosaic_0001>

<llo_original>
// kernel: _gcn_net_forward_impl.1
$region0: #{_gcn_net_forward_impl.1}
  #allocation0 [shape = 'u32[]', space=smem, size = 0x4, offset = 0x4, fixed_abs, tag = 'smem constant byte address 0x4 - core index']
  #allocation1 [shape = 'u32[144,128]{1,0:T(1,128)}', space=vmem, size = 0x12000, scoped, tag = 'internal scratch']
  %s0 = inlined_call_operand.vmem [shape: f32[24,24], index: 0, kind: input, shape index: {}]
  %s1 = inlined_call_operand.vmem [shape: f32[24,24], index: 1, kind: input, shape index: {}]
  %s2 = inlined_call_operand.vmem [shape: f32[24,16], index: 2, kind: input, shape index: {}]
  %s3 = inlined_call_operand.vmem [shape: f32[2,24], index: 3, kind: input, shape index: {}]
  %s4 = inlined_call_operand.vmem [shape: f32[20,20], index: 4, kind: input, shape index: {}]
  %s5 = inlined_call_operand.vmem [shape: f32[20,20], index: 5, kind: input, shape index: {}]
  %s6 = inlined_call_operand.vmem [shape: f32[20,16], index: 6, kind: input, shape index: {}]
  %s7 = inlined_call_operand.vmem [shape: f32[2,20], index: 7, kind: input, shape index: {}]
  %s8 = inlined_call_operand.vmem [shape: f32[48,32], index: 8, kind: input, shape index: {}]
  %s9 = inlined_call_operand.vmem [shape: f32[96,16], index: 9, kind: input, shape index: {}]
  %s10 = inlined_call_operand.vmem [shape: f32[48,32], index: 10, kind: input, shape index: {}]
  %s11 = inlined_call_operand.vmem [shape: f32[96,16], index: 11, kind: input, shape index: {}]
  %s12 = inlined_call_operand.vmem [shape: f32[32,16], index: 12, kind: input, shape index: {}]
  %s13 = inlined_call_operand.vmem [shape: f32[16,128], index: 13, kind: input, shape index: {}]
  %s14 = inlined_call_operand.vmem [shape: f32[16,128], index: 14, kind: input, shape index: {}]
  %s15 = inlined_call_operand.hbm [shape: f32[2,128], index: 15, kind: output, shape index: {}]
  %s16 = sld [smem:[#allocation0]]
  $region70: #{_gcn_net_forward_impl.1} parent=0
    _
  %s18 = ssub.s32 1, %s16
  %s19 = scalar_select 0, %s18, %s16
  $region1: #{_gcn_net_forward_impl.1} parent=0
    #allocation2 [shape = 'u8[1024]{0}', space=vmem, size = 0x400, scoped, tag = 'output window, operand 0, single buffered']
    #allocation3 [shape = 's32[1]{0}', space=sflag, size = 0x4, scoped, tag = 'scoped memory for _gcn_net_forward_impl.1']
    %20 = vsyncpa [#allocation3], 0
    // Predicated region
    $region2: #{_gcn_net_forward_impl.1} parent=1 // pred_check
      _
    $region3: #{_gcn_net_forward_impl.1} parent=1 // pred_check_branch
      %22 = sbr.rel (0) target = $region5
    $region4: #{_gcn_net_forward_impl.1} parent=1 // pred_region
      _
    $region5: #{_gcn_net_forward_impl.1} parent=1 // pred_fallthru
      _
    // Predicated region
    $region6: #{_gcn_net_forward_impl.1} parent=1 // pred_check
      _
    $region7: #{_gcn_net_forward_impl.1} parent=1 // pred_check_branch
      %24 = sbr.rel (0) target = $region9
    $region8: #{_gcn_net_forward_impl.1} parent=1 // pred_region
      _
    $region9: #{_gcn_net_forward_impl.1} parent=1 // pred_fallthru
      _
    // Predicated region
    $region10: #{_gcn_net_forward_impl.1} parent=1 // pred_check
      _
    $region11: #{_gcn_net_forward_impl.1} parent=1 // pred_check_branch
      %26 = sbr.rel (0) target = $region13
    $region12: #{_gcn_net_forward_impl.1} parent=1 // pred_region
      _
    $region13: #{_gcn_net_forward_impl.1} parent=1 // pred_fallthru
      _
    // Predicated region
    $region14: #{_gcn_net_forward_impl.1} parent=1 // pred_check
      _
    $region15: #{_gcn_net_forward_impl.1} parent=1 // pred_check_branch
      %28 = sbr.rel (0) target = $region17
    $region16: #{_gcn_net_forward_impl.1} parent=1 // pred_region
      _
    $region17: #{_gcn_net_forward_impl.1} parent=1 // pred_fallthru
      _
    // Predicated region
    $region18: #{_gcn_net_forward_impl.1} parent=1 // pred_check
      _
    $region19: #{_gcn_net_forward_impl.1} parent=1 // pred_check_branch
      %30 = sbr.rel (0) target = $region21
    $region20: #{_gcn_net_forward_impl.1} parent=1 // pred_region
      _
    $region21: #{_gcn_net_forward_impl.1} parent=1 // pred_fallthru
      _
    // Predicated region
    $region22: #{_gcn_net_forward_impl.1} parent=1 // pred_check
      _
    $region23: #{_gcn_net_forward_impl.1} parent=1 // pred_check_branch
      %32 = sbr.rel (0) target = $region25
    $region24: #{_gcn_net_forward_impl.1} parent=1 // pred_region
      _
    $region25: #{_gcn_net_forward_impl.1} parent=1 // pred_fallthru
      _
    // Predicated region
    $region26: #{_gcn_net_forward_impl.1} parent=1 // pred_check
      _
    $region27: #{_gcn_net_forward_impl.1} parent=1 // pred_check_branch
      %34 = sbr.rel (0) target = $region29
    $region28: #{_gcn_net_forward_impl.1} parent=1 // pred_region
      _
    $region29: #{_gcn_net_forward_impl.1} parent=1 // pred_fallthru
      _
    // Predicated region
    $region30: #{_gcn_net_forward_impl.1} parent=1 // pred_check
      _
    $region31: #{_gcn_net_forward_impl.1} parent=1 // pred_check_branch
      %36 = sbr.rel (0) target = $region33
    $region32: #{_gcn_net_forward_impl.1} parent=1 // pred_region
      _
    $region33: #{_gcn_net_forward_impl.1} parent=1 // pred_fallthru
      _
    // Predicated region
    $region34: #{_gcn_net_forward_impl.1} parent=1 // pred_check
      _
    $region35: #{_gcn_net_forward_impl.1} parent=1 // pred_check_branch
      %38 = sbr.rel (0) target = $region37
    $region36: #{_gcn_net_forward_impl.1} parent=1 // pred_region
      _
    $region37: #{_gcn_net_forward_impl.1} parent=1 // pred_fallthru
      _
    // Predicated region
    $region38: #{_gcn_net_forward_impl.1} parent=1 // pred_check
      _
    $region39: #{_gcn_net_forward_impl.1} parent=1 // pred_check_branch
      %40 = sbr.rel (0) target = $region41
    $region40: #{_gcn_net_forward_impl.1} parent=1 // pred_region
      _
    $region41: #{_gcn_net_forward_impl.1} parent=1 // pred_fallthru
      _
    // Predicated region
    $region42: #{_gcn_net_forward_impl.1} parent=1 // pred_check
      _
    $region43: #{_gcn_net_forward_impl.1} parent=1 // pred_check_branch
      %42 = sbr.rel (0) target = $region45
    $region44: #{_gcn_net_forward_impl.1} parent=1 // pred_region
      _
    $region45: #{_gcn_net_forward_impl.1} parent=1 // pred_fallthru
      _
    // Predicated region
    $region46: #{_gcn_net_forward_impl.1} parent=1 // pred_check
      _
    $region47: #{_gcn_net_forward_impl.1} parent=1 // pred_check_branch
      %44 = sbr.rel (0) target = $region49
    $region48: #{_gcn_net_forward_impl.1} parent=1 // pred_region
      _
    $region49: #{_gcn_net_forward_impl.1} parent=1 // pred_fallthru
      _
    // Predicated region
    $region50: #{_gcn_net_forward_impl.1} parent=1 // pred_check
      _
    $region51: #{_gcn_net_forward_impl.1} parent=1 // pred_check_branch
      %46 = sbr.rel (0) target = $region53
    $region52: #{_gcn_net_forward_impl.1} parent=1 // pred_region
      _
    $region53: #{_gcn_net_forward_impl.1} parent=1 // pred_fallthru
      _
    // Predicated region
    $region54: #{_gcn_net_forward_impl.1} parent=1 // pred_check
      _
    $region55: #{_gcn_net_forward_impl.1} parent=1 // pred_check_branch
      %48 = sbr.rel (0) target = $region57
    $region56: #{_gcn_net_forward_impl.1} parent=1 // pred_region
      _
    $region57: #{_gcn_net_forward_impl.1} parent=1 // pred_fallthru
      _
    // Predicated region
    $region58: #{_gcn_net_forward_impl.1} parent=1 // pred_check
      _
    $region59: #{_gcn_net_forward_impl.1} parent=1 // pred_check_branch
      %50 = sbr.rel (0) target = $region61
    $region60: #{_gcn_net_forward_impl.1} parent=1 // pred_region
      _
    $region61: #{_gcn_net_forward_impl.1} parent=1 // pred_fallthru
      _
    %v51 = vld [vmem:[%s14] sm:$0xff]
    %v52 = vld [vmem:[%s14 + $0x8] sm:$0xff]
    %v53 = vld [vmem:[%s0] sm:$0xff]
    %v54 = vld [vmem:[%s0 + $0x8] sm:$0xff]
    %v55 = vld [vmem:[%s0 + $0x10] sm:$0xff]
    %v56 = vld [vmem:[%s1] sm:$0xff]
    %v57 = vld [vmem:[%s1 + $0x8] sm:$0xff]
    %v58 = vld [vmem:[%s1 + $0x10] sm:$0xff]
    %v59 = vld [vmem:[%s2] sm:$0xff]
    %v60 = vld [vmem:[%s2 + $0x8] sm:$0xff]
    %v61 = vld [vmem:[%s2 + $0x10] sm:$0xff]
    %vm62 = vcmask 195584
    %v64 = vsel %vm62, %v53, 0
    %v67 = vsel %vm62, %v54, 0
    %v70 = vsel %vm62, %v55, 0
    %72 = vmatprep.subr.mxu0 0.0
    %73 = vmatpush1.msra.mxu0 0.0
    %74 = vmatprep.subr.mxu0 0.0
    %75 = vmatpush1.msra.mxu0 0.0
    %76 = vmatprep.subr.mxu0 0.0
    %77 = vmatpush1.msra.mxu0 0.0
    %78 = vmatprep.subr.mxu0 0.0
    %79 = vmatpush1.msra.mxu0 0.0
    %80 = vmatprep.subr.mxu0 0.0
    %81 = vmatpush1.msra.mxu0 0.0
    %82 = vmatprep.subr.mxu0 0.0
    %83 = vmatpush1.msra.mxu0 0.0
    %84 = vmatprep.subr.mxu0 0.0
    %85 = vmatpush1.msra.mxu0 0.0
    %86 = vmatprep.subr.mxu0 0.0
    %87 = vmatpush1.msra.mxu0 0.0
    %88 = vmatprep.subr.mxu0 0.0
    %89 = vmatpush1.msra.mxu0 0.0
    %90 = vmatprep.subr.mxu0 0.0
    %91 = vmatpush1.msra.mxu0 0.0
    %92 = vmatprep.subr.mxu0 0.0
    %93 = vmatpush1.msra.mxu0 0.0
    %94 = vmatprep.subr.mxu0 0.0
    %95 = vmatpush1.msra.mxu0 0.0
    %96 = vmatprep.subr.mxu0 0.0
    %97 = vmatpush1.msra.mxu0 0.0
    %98 = vmatprep.subr.mxu0 0.0
    %99 = vmatpush1.msra.mxu0 %v61
    %100 = vmatprep.subr.mxu0 0.0
    %101 = vmatpush1.msra.mxu0 %v60
    %102 = vmatprep.subr.mxu0 0.0
    %103 = vmatpush1.msra.mxu0 %v59
    %104 = vmatprep.subr.mxu0 0.0
    %105 = vmatpush2.msra.mxu0 0.0
    %106 = vmatprep.subr.mxu0 0.0
    %107 = vmatpush2.msra.mxu0 0.0
    %108 = vmatprep.subr.mxu0 0.0
    %109 = vmatpush2.msra.mxu0 0.0
    %110 = vmatprep.subr.mxu0 0.0
    %111 = vmatpush2.msra.mxu0 0.0
    %112 = vmatprep.subr.mxu0 0.0
    %113 = vmatpush2.msra.mxu0 0.0
    %114 = vmatprep.subr.mxu0 0.0
    %115 = vmatpush2.msra.mxu0 0.0
    %116 = vmatprep.subr.mxu0 0.0
    %117 = vmatpush2.msra.mxu0 0.0
    %118 = vmatprep.subr.mxu0 0.0
    %119 = vmatpush2.msra.mxu0 0.0
    %120 = vmatprep.subr.mxu0 0.0
    %121 = vmatpush2.msra.mxu0 0.0
    %122 = vmatprep.subr.mxu0 0.0
    %123 = vmatpush2.msra.mxu0 0.0
    %124 = vmatprep.subr.mxu0 0.0
    %125 = vmatpush2.msra.mxu0 0.0
    %126 = vmatprep.subr.mxu0 0.0
    %127 = vmatpush2.msra.mxu0 0.0
    %128 = vmatprep.subr.mxu0 0.0
    %129 = vmatpush2.msra.mxu0 0.0
    %130 = vmatprep.subr.mxu0 0.0
    %131 = vmatpush2.msra.mxu0 0.0
    %132 = vmatprep.subr.mxu0 0.0
    %133 = vmatpush2.msra.mxu0 0.0
    %134 = vmatprep.subr.mxu0 0.0
    %135 = vmatpush2.msra.mxu0 0.0
    %136 = vmatprep.mubr.f32.mxu0 0.0
    %137 = vmatmul.mubr.f32.gmra.mxu0 %v64
    %v138 = vpop.f32.mrf.mxu0
    %v139 = vadd.f32 0.0, %v138
    %v140 = vpop.f32.mrf.mxu0
    %141 = vmatprep.mubr.f32.mxu0 0.0
    %142 = vmatmul.mubr.f32.gmra.mxu0 %v67
    %v143 = vpop.f32.mrf.mxu0
    %v144 = vadd.f32 0.0, %v143
    %v145 = vpop.f32.mrf.mxu0
    %146 = vmatprep.mubr.f32.mxu0 0.0
    %147 = vmatmul.mubr.f32.gmra.mxu0 %v70
    %v148 = vpop.f32.mrf.mxu0
    %v149 = vadd.f32 0.0, %v148
    %v150 = vpop.f32.mrf.mxu0
    %151 = vdwg.mxu0
    %v153 = vsel %vm62, %v56, 0
    %v156 = vsel %vm62, %v57, 0
    %v159 = vsel %vm62, %v58, 0
    %161 = vmatprep.subr.mxu0 0.0
    %162 = vmatpush1.msra.mxu0 0.0
    %163 = vmatprep.subr.mxu0 0.0
    %164 = vmatpush1.msra.mxu0 0.0
    %165 = vmatprep.subr.mxu0 0.0
    %166 = vmatpush1.msra.mxu0 0.0
    %167 = vmatprep.subr.mxu0 0.0
    %168 = vmatpush1.msra.mxu0 0.0
    %169 = vmatprep.subr.mxu0 0.0
    %170 = vmatpush1.msra.mxu0 0.0
    %171 = vmatprep.subr.mxu0 0.0
    %172 = vmatpush1.msra.mxu0 0.0
    %173 = vmatprep.subr.mxu0 0.0
    %174 = vmatpush1.msra.mxu0 0.0
    %175 = vmatprep.subr.mxu0 0.0
    %176 = vmatpush1.msra.mxu0 0.0
    %177 = vmatprep.subr.mxu0 0.0
    %178 = vmatpush1.msra.mxu0 0.0
    %179 = vmatprep.subr.mxu0 0.0
    %180 = vmatpush1.msra.mxu0 0.0
    %181 = vmatprep.subr.mxu0 0.0
    %182 = vmatpush1.msra.mxu0 0.0
    %183 = vmatprep.subr.mxu0 0.0
    %184 = vmatpush1.msra.mxu0 0.0
    %185 = vmatprep.subr.mxu0 0.0
    %186 = vmatpush1.msra.mxu0 0.0
    %187 = vmatprep.subr.mxu0 0.0
    %188 = vmatpush1.msra.mxu0 %v61
    %189 = vmatprep.subr.mxu0 0.0
    %190 = vmatpush1.msra.mxu0 %v60
    %191 = vmatprep.subr.mxu0 0.0
    %192 = vmatpush1.msra.mxu0 %v59
    %193 = vmatprep.subr.mxu0 0.0
    %194 = vmatpush2.msra.mxu0 0.0
    %195 = vmatprep.subr.mxu0 0.0
    %196 = vmatpush2.msra.mxu0 0.0
    %197 = vmatprep.subr.mxu0 0.0
    %198 = vmatpush2.msra.mxu0 0.0
    %199 = vmatprep.subr.mxu0 0.0
    %200 = vmatpush2.msra.mxu0 0.0
    %201 = vmatprep.subr.mxu0 0.0
    %202 = vmatpush2.msra.mxu0 0.0
    %203 = vmatprep.subr.mxu0 0.0
    %204 = vmatpush2.msra.mxu0 0.0
    %205 = vmatprep.subr.mxu0 0.0
    %206 = vmatpush2.msra.mxu0 0.0
    %207 = vmatprep.subr.mxu0 0.0
    %208 = vmatpush2.msra.mxu0 0.0
    %209 = vmatprep.subr.mxu0 0.0
    %210 = vmatpush2.msra.mxu0 0.0
    %211 = vmatprep.subr.mxu0 0.0
    %212 = vmatpush2.msra.mxu0 0.0
    %213 = vmatprep.subr.mxu0 0.0
    %214 = vmatpush2.msra.mxu0 0.0
    %215 = vmatprep.subr.mxu0 0.0
    %216 = vmatpush2.msra.mxu0 0.0
    %217 = vmatprep.subr.mxu0 0.0
    %218 = vmatpush2.msra.mxu0 0.0
    %219 = vmatprep.subr.mxu0 0.0
    %220 = vmatpush2.msra.mxu0 0.0
    %221 = vmatprep.subr.mxu0 0.0
    %222 = vmatpush2.msra.mxu0 0.0
    %223 = vmatprep.subr.mxu0 0.0
    %224 = vmatpush2.msra.mxu0 0.0
    %225 = vmatprep.mubr.f32.mxu0 0.0
    %226 = vmatmul.mubr.f32.gmra.mxu0 %v153
    %v227 = vpop.f32.mrf.mxu0
    %v228 = vadd.f32 0.0, %v227
    %v229 = vpop.f32.mrf.mxu0
    %230 = vmatprep.mubr.f32.mxu0 0.0
    %231 = vmatmul.mubr.f32.gmra.mxu0 %v156
    %v232 = vpop.f32.mrf.mxu0
    %v233 = vadd.f32 0.0, %v232
    %v234 = vpop.f32.mrf.mxu0
    %235 = vmatprep.mubr.f32.mxu0 0.0
    %236 = vmatmul.mubr.f32.gmra.mxu0 %v159
    %v237 = vpop.f32.mrf.mxu0
    %v238 = vadd.f32 0.0, %v237
    %v239 = vpop.f32.mrf.mxu0
    %240 = vdwg.mxu0
    %v241 = vld [vmem:[%s8] sm:$0xff]
    %v242 = vld [vmem:[%s8 + $0x8] sm:$0xff]
    %v243 = vld [vmem:[%s8 + $0x10] sm:$0xff]
    %v244 = vld [vmem:[%s8 + $0x18] sm:$0xff]
    %vm245 = vcmask 130048
    %v247 = vsel %vm245, %v228, 0
    %v250 = vsel %vm245, %v233, 0
    %v253 = vsel %vm245, %v238, 0
    %255 = vmatprep.subr.mxu0 0.0
    %256 = vmatpush1.msra.mxu0 0.0
    %257 = vmatprep.subr.mxu0 0.0
    %258 = vmatpush1.msra.mxu0 0.0
    %259 = vmatprep.subr.mxu0 0.0
    %260 = vmatpush1.msra.mxu0 0.0
    %261 = vmatprep.subr.mxu0 0.0
    %262 = vmatpush1.msra.mxu0 0.0
    %263 = vmatprep.subr.mxu0 0.0
    %264 = vmatpush1.msra.mxu0 0.0
    %265 = vmatprep.subr.mxu0 0.0
    %266 = vmatpush1.msra.mxu0 0.0
    %267 = vmatprep.subr.mxu0 0.0
    %268 = vmatpush1.msra.mxu0 0.0
    %269 = vmatprep.subr.mxu0 0.0
    %270 = vmatpush1.msra.mxu0 0.0
    %271 = vmatprep.subr.mxu0 0.0
    %272 = vmatpush1.msra.mxu0 0.0
    %273 = vmatprep.subr.mxu0 0.0
    %274 = vmatpush1.msra.mxu0 0.0
    %275 = vmatprep.subr.mxu0 0.0
    %276 = vmatpush1.msra.mxu0 0.0
    %277 = vmatprep.subr.mxu0 0.0
    %278 = vmatpush1.msra.mxu0 0.0
    %279 = vmatprep.subr.mxu0 0.0
    %280 = vmatpush1.msra.mxu0 0.0
    %281 = vmatprep.subr.mxu0 0.0
    %282 = vmatpush1.msra.mxu0 0.0
    %283 = vmatprep.subr.mxu0 0.0
    %284 = vmatpush1.msra.mxu0 %v244
    %285 = vmatprep.subr.mxu0 0.0
    %286 = vmatpush1.msra.mxu0 %v243
    %287 = vmatprep.subr.mxu0 0.0
    %288 = vmatpush2.msra.mxu0 0.0
    %289 = vmatprep.subr.mxu0 0.0
    %290 = vmatpush2.msra.mxu0 0.0
    %291 = vmatprep.subr.mxu0 0.0
    %292 = vmatpush2.msra.mxu0 0.0
    %293 = vmatprep.subr.mxu0 0.0
    %294 = vmatpush2.msra.mxu0 0.0
    %295 = vmatprep.subr.mxu0 0.0
    %296 = vmatpush2.msra.mxu0 0.0
    %297 = vmatprep.subr.mxu0 0.0
    %298 = vmatpush2.msra.mxu0 0.0
    %299 = vmatprep.subr.mxu0 0.0
    %300 = vmatpush2.msra.mxu0 0.0
    %301 = vmatprep.subr.mxu0 0.0
    %302 = vmatpush2.msra.mxu0 0.0
    %303 = vmatprep.subr.mxu0 0.0
    %304 = vmatpush2.msra.mxu0 0.0
    %305 = vmatprep.subr.mxu0 0.0
    %306 = vmatpush2.msra.mxu0 0.0
    %307 = vmatprep.subr.mxu0 0.0
    %308 = vmatpush2.msra.mxu0 0.0
    %309 = vmatprep.subr.mxu0 0.0
    %310 = vmatpush2.msra.mxu0 0.0
    %311 = vmatprep.subr.mxu0 0.0
    %312 = vmatpush2.msra.mxu0 0.0
    %313 = vmatprep.subr.mxu0 0.0
    %314 = vmatpush2.msra.mxu0 0.0
    %315 = vmatprep.subr.mxu0 0.0
    %316 = vmatpush2.msra.mxu0 0.0
    %317 = vmatprep.subr.mxu0 0.0
    %318 = vmatpush2.msra.mxu0 0.0
    %319 = vmatprep.mubr.f32.mxu0 0.0
    %320 = vmatmul.mubr.f32.gmra.mxu0 %v247
    %v321 = vpop.f32.mrf.mxu0
    %v322 = vadd.f32 0.0, %v321
    %v323 = vpop.f32.mrf.mxu0
    %324 = vmatprep.mubr.f32.mxu0 0.0
    %325 = vmatmul.mubr.f32.gmra.mxu0 %v250
    %v326 = vpop.f32.mrf.mxu0
    %v327 = vadd.f32 0.0, %v326
    %v328 = vpop.f32.mrf.mxu0
    %329 = vmatprep.mubr.f32.mxu0 0.0
    %330 = vmatmul.mubr.f32.gmra.mxu0 %v253
    %v331 = vpop.f32.mrf.mxu0
    %v332 = vadd.f32 0.0, %v331
    %v333 = vpop.f32.mrf.mxu0
    %334 = vdwg.mxu0
    %v336 = vsel %vm245, %v139, 0
    %v339 = vsel %vm245, %v144, 0
    %v342 = vsel %vm245, %v149, 0
    %344 = vmatprep.subr.mxu0 0.0
    %345 = vmatpush1.msra.mxu0 0.0
    %346 = vmatprep.subr.mxu0 0.0
    %347 = vmatpush1.msra.mxu0 0.0
    %348 = vmatprep.subr.mxu0 0.0
    %349 = vmatpush1.msra.mxu0 0.0
    %350 = vmatprep.subr.mxu0 0.0
    %351 = vmatpush1.msra.mxu0 0.0
    %352 = vmatprep.subr.mxu0 0.0
    %353 = vmatpush1.msra.mxu0 0.0
    %354 = vmatprep.subr.mxu0 0.0
    %355 = vmatpush1.msra.mxu0 0.0
    %356 = vmatprep.subr.mxu0 0.0
    %357 = vmatpush1.msra.mxu0 0.0
    %358 = vmatprep.subr.mxu0 0.0
    %359 = vmatpush1.msra.mxu0 0.0
    %360 = vmatprep.subr.mxu0 0.0
    %361 = vmatpush1.msra.mxu0 0.0
    %362 = vmatprep.subr.mxu0 0.0
    %363 = vmatpush1.msra.mxu0 0.0
    %364 = vmatprep.subr.mxu0 0.0
    %365 = vmatpush1.msra.mxu0 0.0
    %366 = vmatprep.subr.mxu0 0.0
    %367 = vmatpush1.msra.mxu0 0.0
    %368 = vmatprep.subr.mxu0 0.0
    %369 = vmatpush1.msra.mxu0 0.0
    %370 = vmatprep.subr.mxu0 0.0
    %371 = vmatpush1.msra.mxu0 0.0
    %372 = vmatprep.subr.mxu0 0.0
    %373 = vmatpush1.msra.mxu0 %v242
    %374 = vmatprep.subr.mxu0 0.0
    %375 = vmatpush1.msra.mxu0 %v241
    %376 = vmatprep.subr.mxu0 0.0
    %377 = vmatpush2.msra.mxu0 0.0
    %378 = vmatprep.subr.mxu0 0.0
    %379 = vmatpush2.msra.mxu0 0.0
    %380 = vmatprep.subr.mxu0 0.0
    %381 = vmatpush2.msra.mxu0 0.0
    %382 = vmatprep.subr.mxu0 0.0
    %383 = vmatpush2.msra.mxu0 0.0
    %384 = vmatprep.subr.mxu0 0.0
    %385 = vmatpush2.msra.mxu0 0.0
    %386 = vmatprep.subr.mxu0 0.0
    %387 = vmatpush2.msra.mxu0 0.0
    %388 = vmatprep.subr.mxu0 0.0
    %389 = vmatpush2.msra.mxu0 0.0
    %390 = vmatprep.subr.mxu0 0.0
    %391 = vmatpush2.msra.mxu0 0.0
    %392 = vmatprep.subr.mxu0 0.0
    %393 = vmatpush2.msra.mxu0 0.0
    %394 = vmatprep.subr.mxu0 0.0
    %395 = vmatpush2.msra.mxu0 0.0
    %396 = vmatprep.subr.mxu0 0.0
    %397 = vmatpush2.msra.mxu0 0.0
    %398 = vmatprep.subr.mxu0 0.0
    %399 = vmatpush2.msra.mxu0 0.0
    %400 = vmatprep.subr.mxu0 0.0
    %401 = vmatpush2.msra.mxu0 0.0
    %402 = vmatprep.subr.mxu0 0.0
    %403 = vmatpush2.msra.mxu0 0.0
    %404 = vmatprep.subr.mxu0 0.0
    %405 = vmatpush2.msra.mxu0 0.0
    %406 = vmatprep.subr.mxu0 0.0
    %407 = vmatpush2.msra.mxu0 0.0
    %408 = vmatprep.mubr.f32.mxu0 0.0
    %409 = vmatmul.mubr.f32.gmra.mxu0 %v336
    %v410 = vpop.f32.mrf.mxu0
    %v411 = vadd.f32 %v322, %v410
    %v412 = vpop.f32.mrf.mxu0
    %413 = vmatprep.mubr.f32.mxu0 0.0
    %414 = vmatmul.mubr.f32.gmra.mxu0 %v339
    %v415 = vpop.f32.mrf.mxu0
    %v416 = vadd.f32 %v327, %v415
    %v417 = vpop.f32.mrf.mxu0
    %418 = vmatprep.mubr.f32.mxu0 0.0
    %419 = vmatmul.mubr.f32.gmra.mxu0 %v342
    %v420 = vpop.f32.mrf.mxu0
    %v421 = vadd.f32 %v332, %v420
    %v422 = vpop.f32.mrf.mxu0
    %423 = vdwg.mxu0
    %v424 = vld [vmem:[%s8 + $0x20] sm:$0xff]
    %v425 = vld [vmem:[%s8 + $0x28] sm:$0xff]
    %v427 = vsel %vm245, %v59, 0
    %v430 = vsel %vm245, %v60, 0
    %v433 = vsel %vm245, %v61, 0
    %435 = vmatprep.subr.mxu0 0.0
    %436 = vmatpush1.msra.mxu0 0.0
    %437 = vmatprep.subr.mxu0 0.0
    %438 = vmatpush1.msra.mxu0 0.0
    %439 = vmatprep.subr.mxu0 0.0
    %440 = vmatpush1.msra.mxu0 0.0
    %441 = vmatprep.subr.mxu0 0.0
    %442 = vmatpush1.msra.mxu0 0.0
    %443 = vmatprep.subr.mxu0 0.0
    %444 = vmatpush1.msra.mxu0 0.0
    %445 = vmatprep.subr.mxu0 0.0
    %446 = vmatpush1.msra.mxu0 0.0
    %447 = vmatprep.subr.mxu0 0.0
    %448 = vmatpush1.msra.mxu0 0.0
    %449 = vmatprep.subr.mxu0 0.0
    %450 = vmatpush1.msra.mxu0 0.0
    %451 = vmatprep.subr.mxu0 0.0
    %452 = vmatpush1.msra.mxu0 0.0
    %453 = vmatprep.subr.mxu0 0.0
    %454 = vmatpush1.msra.mxu0 0.0
    %455 = vmatprep.subr.mxu0 0.0
    %456 = vmatpush1.msra.mxu0 0.0
    %457 = vmatprep.subr.mxu0 0.0
    %458 = vmatpush1.msra.mxu0 0.0
    %459 = vmatprep.subr.mxu0 0.0
    %460 = vmatpush1.msra.mxu0 0.0
    %461 = vmatprep.subr.mxu0 0.0
    %462 = vmatpush1.msra.mxu0 0.0
    %463 = vmatprep.subr.mxu0 0.0
    %464 = vmatpush1.msra.mxu0 %v425
    %465 = vmatprep.subr.mxu0 0.0
    %466 = vmatpush1.msra.mxu0 %v424
    %467 = vmatprep.subr.mxu0 0.0
    %468 = vmatpush2.msra.mxu0 0.0
    %469 = vmatprep.subr.mxu0 0.0
    %470 = vmatpush2.msra.mxu0 0.0
    %471 = vmatprep.subr.mxu0 0.0
    %472 = vmatpush2.msra.mxu0 0.0
    %473 = vmatprep.subr.mxu0 0.0
    %474 = vmatpush2.msra.mxu0 0.0
    %475 = vmatprep.subr.mxu0 0.0
    %476 = vmatpush2.msra.mxu0 0.0
    %477 = vmatprep.subr.mxu0 0.0
    %478 = vmatpush2.msra.mxu0 0.0
    %479 = vmatprep.subr.mxu0 0.0
    %480 = vmatpush2.msra.mxu0 0.0
    %481 = vmatprep.subr.mxu0 0.0
    %482 = vmatpush2.msra.mxu0 0.0
    %483 = vmatprep.subr.mxu0 0.0
    %484 = vmatpush2.msra.mxu0 0.0
    %485 = vmatprep.subr.mxu0 0.0
    %486 = vmatpush2.msra.mxu0 0.0
    %487 = vmatprep.subr.mxu0 0.0
    %488 = vmatpush2.msra.mxu0 0.0
    %489 = vmatprep.subr.mxu0 0.0
    %490 = vmatpush2.msra.mxu0 0.0
    %491 = vmatprep.subr.mxu0 0.0
    %492 = vmatpush2.msra.mxu0 0.0
    %493 = vmatprep.subr.mxu0 0.0
    %494 = vmatpush2.msra.mxu0 0.0
    %495 = vmatprep.subr.mxu0 0.0
    %496 = vmatpush2.msra.mxu0 0.0
    %497 = vmatprep.subr.mxu0 0.0
    %498 = vmatpush2.msra.mxu0 0.0
    %499 = vmatprep.mubr.f32.mxu0 0.0
    %500 = vmatmul.mubr.f32.gmra.mxu0 %v427
    %v501 = vpop.f32.mrf.mxu0
    %v502 = vadd.f32 0.0, %v501
    %v503 = vpop.f32.mrf.mxu0
    %504 = vmatprep.mubr.f32.mxu0 0.0
    %505 = vmatmul.mubr.f32.gmra.mxu0 %v430
    %v506 = vpop.f32.mrf.mxu0
    %v507 = vadd.f32 0.0, %v506
    %v508 = vpop.f32.mrf.mxu0
    %509 = vmatprep.mubr.f32.mxu0 0.0
    %510 = vmatmul.mubr.f32.gmra.mxu0 %v433
    %v511 = vpop.f32.mrf.mxu0
    %v512 = vadd.f32 0.0, %v511
    %v513 = vpop.f32.mrf.mxu0
    %514 = vdwg.mxu0
    %v515 = vadd.f32 %v411, %v502
    %v516 = vadd.f32 %v416, %v507
    %v517 = vadd.f32 %v421, %v512
    %v518 = vlaneseq
    %v519 = vshrl.u32 %v518, 7
    %v520 = vsub.s32 0, %v519
    %v521 = vrot.slane %v51, %v520
    %v522 = vadd.f32 %v515, %v521
    %v523 = vadd.f32 %v516, %v521
    %v524 = vadd.f32 %v517, %v521
    %vm525 = vcmask 261120
    %v526 = vsel %vm525, %v522, 0.0
    %v527 = vsel %vm525, %v523, 0.0
    %v528 = vadd.f32 %v526, %v527
    %v529 = vsel %vm525, %v524, 0.0
    %v530 = vadd.f32 %v528, %v529
    %v531 = vrot.slane %v530, 4
    %v532 = vadd.f32 %v530, %v531
    %v533 = vrot.slane %v532, 2
    %v534 = vadd.f32 %v532, %v533
    %v535 = vrot.slane %v534, 1
    %v536 = vadd.f32 %v534, %v535
    %v537 = vrcp.pop 24.0
    %v538 = vmul.f32 %v536, %v537
    %v539 = vsub.f32 %v522, %v538
    %v540 = vsub.f32 %v523, %v538
    %v541 = vsub.f32 %v524, %v538
    %v542 = vmul.f32 %v539, %v539
    %v543 = vmul.f32 %v540, %v540
    %v544 = vmul.f32 %v541, %v541
    %v545 = vsel %vm525, %v542, 0.0
    %v546 = vsel %vm525, %v543, 0.0
    %v547 = vadd.f32 %v545, %v546
    %v548 = vsel %vm525, %v544, 0.0
    %v549 = vadd.f32 %v547, %v548
    %v550 = vrot.slane %v549, 4
    %v551 = vadd.f32 %v549, %v550
    %v552 = vrot.slane %v551, 2
    %v553 = vadd.f32 %v551, %v552
    %v554 = vrot.slane %v553, 1
    %v555 = vadd.f32 %v553, %v554
    %v556 = vmul.f32 %v555, %v537
    %v557 = vadd.f32 %v556, 1e-05
    %v558 = vrsqrt.pop %v557
    %v559 = vmul.f32 %v539, %v558
    %v560 = vmul.f32 %v540, %v558
    %v561 = vmul.f32 %v541, %v558
    %v562 = vlaneseq
    %v563 = vshrl.u32 %v562, 7
    %v564 = vsub.s32 1, %v563
    %v565 = vrot.slane %v51, %v564
    %v566 = vmul.f32 %v559, %v565
    %v567 = vmul.f32 %v560, %v565
    %v568 = vmul.f32 %v561, %v565
    %v569 = vlaneseq
    %v570 = vshrl.u32 %v569, 7
    %v571 = vsub.s32 2, %v570
    %v572 = vrot.slane %v51, %v571
    %v573 = vadd.f32 %v566, %v572
    %v574 = vadd.f32 %v567, %v572
    %v575 = vadd.f32 %v568, %v572
    %vm576 = vcmp.ge.f32.partialorder %v573, 0.0
    %vm577 = vcmp.ge.f32.partialorder %v574, 0.0
    %vm578 = vcmp.ge.f32.partialorder %v575, 0.0
    %v579 = vmul.f32 %v573, 0.01
    %v580 = vmul.f32 %v574, 0.01
    %v581 = vmul.f32 %v575, 0.01
    %v582 = vsel %vm576, %v573, %v579
    %v583 = vsel %vm577, %v574, %v580
    %v584 = vsel %vm578, %v575, %v581
    %v585 = vld [vmem:[%s9] sm:$0xff]
    %v586 = vld [vmem:[%s9 + $0x8] sm:$0xff]
    %v587 = vld [vmem:[%s9 + $0x10] sm:$0xff]
    %v588 = vld [vmem:[%s9 + $0x18] sm:$0xff]
    %v590 = vsel %vm525, %v582, 0
    %v593 = vsel %vm525, %v583, 0
    %v596 = vsel %vm525, %v584, 0
    %598 = vmatprep.subr.mxu0 0.0
    %599 = vmatpush1.msra.mxu0 0.0
    %600 = vmatprep.subr.mxu0 0.0
    %601 = vmatpush1.msra.mxu0 0.0
    %602 = vmatprep.subr.mxu0 0.0
    %603 = vmatpush1.msra.mxu0 0.0
    %604 = vmatprep.subr.mxu0 0.0
    %605 = vmatpush1.msra.mxu0 0.0
    %606 = vmatprep.subr.mxu0 0.0
    %607 = vmatpush1.msra.mxu0 0.0
    %608 = vmatprep.subr.mxu0 0.0
    %609 = vmatpush1.msra.mxu0 0.0
    %610 = vmatprep.subr.mxu0 0.0
    %611 = vmatpush1.msra.mxu0 0.0
    %612 = vmatprep.subr.mxu0 0.0
    %613 = vmatpush1.msra.mxu0 0.0
    %614 = vmatprep.subr.mxu0 0.0
    %615 = vmatpush1.msra.mxu0 0.0
    %616 = vmatprep.subr.mxu0 0.0
    %617 = vmatpush1.msra.mxu0 0.0
    %618 = vmatprep.subr.mxu0 0.0
    %619 = vmatpush1.msra.mxu0 0.0
    %620 = vmatprep.subr.mxu0 0.0
    %621 = vmatpush1.msra.mxu0 0.0
    %622 = vmatprep.subr.mxu0 0.0
    %623 = vmatpush1.msra.mxu0 %v588
    %624 = vmatprep.subr.mxu0 0.0
    %625 = vmatpush1.msra.mxu0 %v587
    %626 = vmatprep.subr.mxu0 0.0
    %627 = vmatpush1.msra.mxu0 %v586
    %628 = vmatprep.subr.mxu0 0.0
    %629 = vmatpush1.msra.mxu0 %v585
    %630 = vmatprep.subr.mxu0 0.0
    %631 = vmatpush2.msra.mxu0 0.0
    %632 = vmatprep.subr.mxu0 0.0
    %633 = vmatpush2.msra.mxu0 0.0
    %634 = vmatprep.subr.mxu0 0.0
    %635 = vmatpush2.msra.mxu0 0.0
    %636 = vmatprep.subr.mxu0 0.0
    %637 = vmatpush2.msra.mxu0 0.0
    %638 = vmatprep.subr.mxu0 0.0
    %639 = vmatpush2.msra.mxu0 0.0
    %640 = vmatprep.subr.mxu0 0.0
    %641 = vmatpush2.msra.mxu0 0.0
    %642 = vmatprep.subr.mxu0 0.0
    %643 = vmatpush2.msra.mxu0 0.0
    %644 = vmatprep.subr.mxu0 0.0
    %645 = vmatpush2.msra.mxu0 0.0
    %646 = vmatprep.subr.mxu0 0.0
    %647 = vmatpush2.msra.mxu0 0.0
    %648 = vmatprep.subr.mxu0 0.0
    %649 = vmatpush2.msra.mxu0 0.0
    %650 = vmatprep.subr.mxu0 0.0
    %651 = vmatpush2.msra.mxu0 0.0
    %652 = vmatprep.subr.mxu0 0.0
    %653 = vmatpush2.msra.mxu0 0.0
    %654 = vmatprep.subr.mxu0 0.0
    %655 = vmatpush2.msra.mxu0 0.0
    %656 = vmatprep.subr.mxu0 0.0
    %657 = vmatpush2.msra.mxu0 0.0
    %658 = vmatprep.subr.mxu0 0.0
    %659 = vmatpush2.msra.mxu0 0.0
    %660 = vmatprep.subr.mxu0 0.0
    %661 = vmatpush2.msra.mxu0 0.0
    %662 = vmatprep.mubr.f32.mxu0 0.0
    %663 = vmatmul.mubr.f32.gmra.mxu0 %v590
    %v664 = vpop.f32.mrf.mxu0
    %v665 = vadd.f32 0.0, %v664
    %v666 = vpop.f32.mrf.mxu0
    %667 = vmatprep.mubr.f32.mxu0 0.0
    %668 = vmatmul.mubr.f32.gmra.mxu0 %v593
    %v669 = vpop.f32.mrf.mxu0
    %v670 = vadd.f32 0.0, %v669
    %v671 = vpop.f32.mrf.mxu0
    %672 = vmatprep.mubr.f32.mxu0 0.0
    %673 = vmatmul.mubr.f32.gmra.mxu0 %v596
    %v674 = vpop.f32.mrf.mxu0
    %v675 = vadd.f32 0.0, %v674
    %v676 = vpop.f32.mrf.mxu0
    %677 = vdwg.mxu0
    %v678 = vld [vmem:[%s9 + $0x20] sm:$0xff]
    %v679 = vld [vmem:[%s9 + $0x28] sm:$0xff]
    %v680 = vld [vmem:[%s9 + $0x30] sm:$0xff]
    %v681 = vld [vmem:[%s9 + $0x38] sm:$0xff]
    %682 = vmatprep.subr.mxu0 0.0
    %683 = vmatpush1.msra.mxu0 0.0
    %684 = vmatprep.subr.mxu0 0.0
    %685 = vmatpush1.msra.mxu0 0.0
    %686 = vmatprep.subr.mxu0 0.0
    %687 = vmatpush1.msra.mxu0 0.0
    %688 = vmatprep.subr.mxu0 0.0
    %689 = vmatpush1.msra.mxu0 0.0
    %690 = vmatprep.subr.mxu0 0.0
    %691 = vmatpush1.msra.mxu0 0.0
    %692 = vmatprep.subr.mxu0 0.0
    %693 = vmatpush1.msra.mxu0 0.0
    %694 = vmatprep.subr.mxu0 0.0
    %695 = vmatpush1.msra.mxu0 0.0
    %696 = vmatprep.subr.mxu0 0.0
    %697 = vmatpush1.msra.mxu0 0.0
    %698 = vmatprep.subr.mxu0 0.0
    %699 = vmatpush1.msra.mxu0 0.0
    %700 = vmatprep.subr.mxu0 0.0
    %701 = vmatpush1.msra.mxu0 0.0
    %702 = vmatprep.subr.mxu0 0.0
    %703 = vmatpush1.msra.mxu0 0.0
    %704 = vmatprep.subr.mxu0 0.0
    %705 = vmatpush1.msra.mxu0 0.0
    %706 = vmatprep.subr.mxu0 0.0
    %707 = vmatpush1.msra.mxu0 %v681
    %708 = vmatprep.subr.mxu0 0.0
    %709 = vmatpush1.msra.mxu0 %v680
    %710 = vmatprep.subr.mxu0 0.0
    %711 = vmatpush1.msra.mxu0 %v679
    %712 = vmatprep.subr.mxu0 0.0
    %713 = vmatpush1.msra.mxu0 %v678
    %714 = vmatprep.subr.mxu0 0.0
    %715 = vmatpush2.msra.mxu0 0.0
    %716 = vmatprep.subr.mxu0 0.0
    %717 = vmatpush2.msra.mxu0 0.0
    %718 = vmatprep.subr.mxu0 0.0
    %719 = vmatpush2.msra.mxu0 0.0
    %720 = vmatprep.subr.mxu0 0.0
    %721 = vmatpush2.msra.mxu0 0.0
    %722 = vmatprep.subr.mxu0 0.0
    %723 = vmatpush2.msra.mxu0 0.0
    %724 = vmatprep.subr.mxu0 0.0
    %725 = vmatpush2.msra.mxu0 0.0
    %726 = vmatprep.subr.mxu0 0.0
    %727 = vmatpush2.msra.mxu0 0.0
    %728 = vmatprep.subr.mxu0 0.0
    %729 = vmatpush2.msra.mxu0 0.0
    %730 = vmatprep.subr.mxu0 0.0
    %731 = vmatpush2.msra.mxu0 0.0
    %732 = vmatprep.subr.mxu0 0.0
    %733 = vmatpush2.msra.mxu0 0.0
    %734 = vmatprep.subr.mxu0 0.0
    %735 = vmatpush2.msra.mxu0 0.0
    %736 = vmatprep.subr.mxu0 0.0
    %737 = vmatpush2.msra.mxu0 0.0
    %738 = vmatprep.subr.mxu0 0.0
    %739 = vmatpush2.msra.mxu0 0.0
    %740 = vmatprep.subr.mxu0 0.0
    %741 = vmatpush2.msra.mxu0 0.0
    %742 = vmatprep.subr.mxu0 0.0
    %743 = vmatpush2.msra.mxu0 0.0
    %744 = vmatprep.subr.mxu0 0.0
    %745 = vmatpush2.msra.mxu0 0.0
    %746 = vmatprep.mubr.f32.mxu0 0.0
    %747 = vmatmul.mubr.f32.gmra.mxu0 %v590
    %v748 = vpop.f32.mrf.mxu0
    %v749 = vadd.f32 0.0, %v748
    %v750 = vpop.f32.mrf.mxu0
    %751 = vmatprep.mubr.f32.mxu0 0.0
    %752 = vmatmul.mubr.f32.gmra.mxu0 %v593
    %v753 = vpop.f32.mrf.mxu0
    %v754 = vadd.f32 0.0, %v753
    %v755 = vpop.f32.mrf.mxu0
    %756 = vmatprep.mubr.f32.mxu0 0.0
    %757 = vmatmul.mubr.f32.gmra.mxu0 %v596
    %v758 = vpop.f32.mrf.mxu0
    %v759 = vadd.f32 0.0, %v758
    %v760 = vpop.f32.mrf.mxu0
    %761 = vdwg.mxu0
    %v762 = vld [vmem:[%s9 + $0x40] sm:$0xff]
    %v763 = vld [vmem:[%s9 + $0x48] sm:$0xff]
    %v764 = vld [vmem:[%s9 + $0x50] sm:$0xff]
    %v765 = vld [vmem:[%s9 + $0x58] sm:$0xff]
    %766 = vmatprep.subr.mxu0 0.0
    %767 = vmatpush1.msra.mxu0 0.0
    %768 = vmatprep.subr.mxu0 0.0
    %769 = vmatpush1.msra.mxu0 0.0
    %770 = vmatprep.subr.mxu0 0.0
    %771 = vmatpush1.msra.mxu0 0.0
    %772 = vmatprep.subr.mxu0 0.0
    %773 = vmatpush1.msra.mxu0 0.0
    %774 = vmatprep.subr.mxu0 0.0
    %775 = vmatpush1.msra.mxu0 0.0
    %776 = vmatprep.subr.mxu0 0.0
    %777 = vmatpush1.msra.mxu0 0.0
    %778 = vmatprep.subr.mxu0 0.0
    %779 = vmatpush1.msra.mxu0 0.0
    %780 = vmatprep.subr.mxu0 0.0
    %781 = vmatpush1.msra.mxu0 0.0
    %782 = vmatprep.subr.mxu0 0.0
    %783 = vmatpush1.msra.mxu0 0.0
    %784 = vmatprep.subr.mxu0 0.0
    %785 = vmatpush1.msra.mxu0 0.0
    %786 = vmatprep.subr.mxu0 0.0
    %787 = vmatpush1.msra.mxu0 0.0
    %788 = vmatprep.subr.mxu0 0.0
    %789 = vmatpush1.msra.mxu0 0.0
    %790 = vmatprep.subr.mxu0 0.0
    %791 = vmatpush1.msra.mxu0 %v765
    %792 = vmatprep.subr.mxu0 0.0
    %793 = vmatpush1.msra.mxu0 %v764
    %794 = vmatprep.subr.mxu0 0.0
    %795 = vmatpush1.msra.mxu0 %v763
    %796 = vmatprep.subr.mxu0 0.0
    %797 = vmatpush1.msra.mxu0 %v762
    %798 = vmatprep.subr.mxu0 0.0
    %799 = vmatpush2.msra.mxu0 0.0
    %800 = vmatprep.subr.mxu0 0.0
    %801 = vmatpush2.msra.mxu0 0.0
    %802 = vmatprep.subr.mxu0 0.0
    %803 = vmatpush2.msra.mxu0 0.0
    %804 = vmatprep.subr.mxu0 0.0
    %805 = vmatpush2.msra.mxu0 0.0
    %806 = vmatprep.subr.mxu0 0.0
    %807 = vmatpush2.msra.mxu0 0.0
    %808 = vmatprep.subr.mxu0 0.0
    %809 = vmatpush2.msra.mxu0 0.0
    %810 = vmatprep.subr.mxu0 0.0
    %811 = vmatpush2.msra.mxu0 0.0
    %812 = vmatprep.subr.mxu0 0.0
    %813 = vmatpush2.msra.mxu0 0.0
    %814 = vmatprep.subr.mxu0 0.0
    %815 = vmatpush2.msra.mxu0 0.0
    %816 = vmatprep.subr.mxu0 0.0
    %817 = vmatpush2.msra.mxu0 0.0
    %818 = vmatprep.subr.mxu0 0.0
    %819 = vmatpush2.msra.mxu0 0.0
    %820 = vmatprep.subr.mxu0 0.0
    %821 = vmatpush2.msra.mxu0 0.0
    %822 = vmatprep.subr.mxu0 0.0
    %823 = vmatpush2.msra.mxu0 0.0
    %824 = vmatprep.subr.mxu0 0.0
    %825 = vmatpush2.msra.mxu0 0.0
    %826 = vmatprep.subr.mxu0 0.0
    %827 = vmatpush2.msra.mxu0 0.0
    %828 = vmatprep.subr.mxu0 0.0
    %829 = vmatpush2.msra.mxu0 0.0
    %830 = vmatprep.mubr.f32.mxu0 0.0
    %831 = vmatmul.mubr.f32.gmra.mxu0 %v590
    %v832 = vpop.f32.mrf.mxu0
    %v833 = vadd.f32 0.0, %v832
    %v834 = vpop.f32.mrf.mxu0
    %835 = vmatprep.mubr.f32.mxu0 0.0
    %836 = vmatmul.mubr.f32.gmra.mxu0 %v593
    %v837 = vpop.f32.mrf.mxu0
    %v838 = vadd.f32 0.0, %v837
    %v839 = vpop.f32.mrf.mxu0
    %840 = vmatprep.mubr.f32.mxu0 0.0
    %841 = vmatmul.mubr.f32.gmra.mxu0 %v596
    %v842 = vpop.f32.mrf.mxu0
    %v843 = vadd.f32 0.0, %v842
    %v844 = vpop.f32.mrf.mxu0
    %845 = vdwg.mxu0
    %846 = vmatprep.subr.mxu0 0.0
    %847 = vmatpush1.msra.mxu0 0.0
    %848 = vmatprep.subr.mxu0 0.0
    %849 = vmatpush1.msra.mxu0 0.0
    %850 = vmatprep.subr.mxu0 0.0
    %851 = vmatpush1.msra.mxu0 0.0
    %852 = vmatprep.subr.mxu0 0.0
    %853 = vmatpush1.msra.mxu0 0.0
    %854 = vmatprep.subr.mxu0 0.0
    %855 = vmatpush1.msra.mxu0 0.0
    %856 = vmatprep.subr.mxu0 0.0
    %857 = vmatpush1.msra.mxu0 0.0
    %858 = vmatprep.subr.mxu0 0.0
    %859 = vmatpush1.msra.mxu0 0.0
    %860 = vmatprep.subr.mxu0 0.0
    %861 = vmatpush1.msra.mxu0 0.0
    %862 = vmatprep.subr.mxu0 0.0
    %863 = vmatpush1.msra.mxu0 0.0
    %864 = vmatprep.subr.mxu0 0.0
    %865 = vmatpush1.msra.mxu0 0.0
    %866 = vmatprep.subr.mxu0 0.0
    %867 = vmatpush1.msra.mxu0 0.0
    %868 = vmatprep.subr.mxu0 0.0
    %869 = vmatpush1.msra.mxu0 0.0
    %870 = vmatprep.subr.mxu0 0.0
    %871 = vmatpush1.msra.mxu0 0.0
    %872 = vmatprep.subr.mxu0 0.0
    %873 = vmatpush1.msra.mxu0 %v759
    %874 = vmatprep.subr.mxu0 0.0
    %875 = vmatpush1.msra.mxu0 %v754
    %876 = vmatprep.subr.mxu0 0.0
    %877 = vmatpush1.msra.mxu0 %v749
    %878 = vmatprep.subr.mxu0 0.0
    %879 = vmatpush2.msra.mxu0 0.0
    %880 = vmatprep.subr.mxu0 0.0
    %881 = vmatpush2.msra.mxu0 0.0
    %882 = vmatprep.subr.mxu0 0.0
    %883 = vmatpush2.msra.mxu0 0.0
    %884 = vmatprep.subr.mxu0 0.0
    %885 = vmatpush2.msra.mxu0 0.0
    %886 = vmatprep.subr.mxu0 0.0
    %887 = vmatpush2.msra.mxu0 0.0
    %888 = vmatprep.subr.mxu0 0.0
    %889 = vmatpush2.msra.mxu0 0.0
    %890 = vmatprep.subr.mxu0 0.0
    %891 = vmatpush2.msra.mxu0 0.0
    %892 = vmatprep.subr.mxu0 0.0
    %893 = vmatpush2.msra.mxu0 0.0
    %894 = vmatprep.subr.mxu0 0.0
    %895 = vmatpush2.msra.mxu0 0.0
    %896 = vmatprep.subr.mxu0 0.0
    %897 = vmatpush2.msra.mxu0 0.0
    %898 = vmatprep.subr.mxu0 0.0
    %899 = vmatpush2.msra.mxu0 0.0
    %900 = vmatprep.subr.mxu0 0.0
    %901 = vmatpush2.msra.mxu0 0.0
    %902 = vmatprep.subr.mxu0 0.0
    %903 = vmatpush2.msra.mxu0 0.0
    %904 = vmatprep.subr.mxu0 0.0
    %905 = vmatpush2.msra.mxu0 0.0
    %906 = vmatprep.subr.mxu0 0.0
    %907 = vmatpush2.msra.mxu0 0.0
    %908 = vmatprep.subr.mxu0 0.0
    %909 = vmatpush2.msra.mxu0 0.0
    %910 = vmatprep.mubr.f32.mxu0 0.0
    %911 = vmatmul.mubr.f32.gmra.mxu0 %v153
    %v912 = vpop.f32.mrf.mxu0
    %v913 = vadd.f32 0.0, %v912
    %v914 = vpop.f32.mrf.mxu0
    %915 = vmatprep.mubr.f32.mxu0 0.0
    %916 = vmatmul.mubr.f32.gmra.mxu0 %v156
    %v917 = vpop.f32.mrf.mxu0
    %v918 = vadd.f32 0.0, %v917
    %v919 = vpop.f32.mrf.mxu0
    %920 = vmatprep.mubr.f32.mxu0 0.0
    %921 = vmatmul.mubr.f32.gmra.mxu0 %v159
    %v922 = vpop.f32.mrf.mxu0
    %v923 = vadd.f32 0.0, %v922
    %v924 = vpop.f32.mrf.mxu0
    %925 = vdwg.mxu0
    %926 = vmatprep.subr.mxu0 0.0
    %927 = vmatpush1.msra.mxu0 0.0
    %928 = vmatprep.subr.mxu0 0.0
    %929 = vmatpush1.msra.mxu0 0.0
    %930 = vmatprep.subr.mxu0 0.0
    %931 = vmatpush1.msra.mxu0 0.0
    %932 = vmatprep.subr.mxu0 0.0
    %933 = vmatpush1.msra.mxu0 0.0
    %934 = vmatprep.subr.mxu0 0.0
    %935 = vmatpush1.msra.mxu0 0.0
    %936 = vmatprep.subr.mxu0 0.0
    %937 = vmatpush1.msra.mxu0 0.0
    %938 = vmatprep.subr.mxu0 0.0
    %939 = vmatpush1.msra.mxu0 0.0
    %940 = vmatprep.subr.mxu0 0.0
    %941 = vmatpush1.msra.mxu0 0.0
    %942 = vmatprep.subr.mxu0 0.0
    %943 = vmatpush1.msra.mxu0 0.0
    %944 = vmatprep.subr.mxu0 0.0
    %945 = vmatpush1.msra.mxu0 0.0
    %946 = vmatprep.subr.mxu0 0.0
    %947 = vmatpush1.msra.mxu0 0.0
    %948 = vmatprep.subr.mxu0 0.0
    %949 = vmatpush1.msra.mxu0 0.0
    %950 = vmatprep.subr.mxu0 0.0
    %951 = vmatpush1.msra.mxu0 0.0
    %952 = vmatprep.subr.mxu0 0.0
    %953 = vmatpush1.msra.mxu0 %v675
    %954 = vmatprep.subr.mxu0 0.0
    %955 = vmatpush1.msra.mxu0 %v670
    %956 = vmatprep.subr.mxu0 0.0
    %957 = vmatpush1.msra.mxu0 %v665
    %958 = vmatprep.subr.mxu0 0.0
    %959 = vmatpush2.msra.mxu0 0.0
    %960 = vmatprep.subr.mxu0 0.0
    %961 = vmatpush2.msra.mxu0 0.0
    %962 = vmatprep.subr.mxu0 0.0
    %963 = vmatpush2.msra.mxu0 0.0
    %964 = vmatprep.subr.mxu0 0.0
    %965 = vmatpush2.msra.mxu0 0.0
    %966 = vmatprep.subr.mxu0 0.0
    %967 = vmatpush2.msra.mxu0 0.0
    %968 = vmatprep.subr.mxu0 0.0
    %969 = vmatpush2.msra.mxu0 0.0
    %970 = vmatprep.subr.mxu0 0.0
    %971 = vmatpush2.msra.mxu0 0.0
    %972 = vmatprep.subr.mxu0 0.0
    %973 = vmatpush2.msra.mxu0 0.0
    %974 = vmatprep.subr.mxu0 0.0
    %975 = vmatpush2.msra.mxu0 0.0
    %976 = vmatprep.subr.mxu0 0.0
    %977 = vmatpush2.msra.mxu0 0.0
    %978 = vmatprep.subr.mxu0 0.0
    %979 = vmatpush2.msra.mxu0 0.0
    %980 = vmatprep.subr.mxu0 0.0
    %981 = vmatpush2.msra.mxu0 0.0
    %982 = vmatprep.subr.mxu0 0.0
    %983 = vmatpush2.msra.mxu0 0.0
    %984 = vmatprep.subr.mxu0 0.0
    %985 = vmatpush2.msra.mxu0 0.0
    %986 = vmatprep.subr.mxu0 0.0
    %987 = vmatpush2.msra.mxu0 0.0
    %988 = vmatprep.subr.mxu0 0.0
    %989 = vmatpush2.msra.mxu0 0.0
    %990 = vmatprep.mubr.f32.mxu0 0.0
    %991 = vmatmul.mubr.f32.gmra.mxu0 %v64
    %v992 = vpop.f32.mrf.mxu0
    %v993 = vadd.f32 %v913, %v992
    %v994 = vpop.f32.mrf.mxu0
    %995 = vmatprep.mubr.f32.mxu0 0.0
    %996 = vmatmul.mubr.f32.gmra.mxu0 %v67
    %v997 = vpop.f32.mrf.mxu0
    %v998 = vadd.f32 %v918, %v997
    %v999 = vpop.f32.mrf.mxu0
    %1000 = vmatprep.mubr.f32.mxu0 0.0
    %1001 = vmatmul.mubr.f32.gmra.mxu0 %v70
    %v1002 = vpop.f32.mrf.mxu0
    %v1003 = vadd.f32 %v923, %v1002
    %v1004 = vpop.f32.mrf.mxu0
    %1005 = vdwg.mxu0
    %v1006 = vadd.f32 %v993, %v833
    %v1007 = vadd.f32 %v998, %v838
    %v1008 = vadd.f32 %v1003, %v843
    %v1009 = vlaneseq
    %v1010 = vshrl.u32 %v1009, 7
    %v1011 = vsub.s32 3, %v1010
    %v1012 = vrot.slane %v51, %v1011
    %v1013 = vadd.f32 %v1006, %v1012
    %v1014 = vadd.f32 %v1007, %v1012
    %v1015 = vadd.f32 %v1008, %v1012
    %v1016 = vsel %vm245, %v1013, 0.0
    %v1017 = vsel %vm245, %v1014, 0.0
    %v1018 = vadd.f32 %v1016, %v1017
    %v1019 = vsel %vm245, %v1015, 0.0
    %v1020 = vadd.f32 %v1018, %v1019
    %v1021 = vrot.slane %v1020, 4
    %v1022 = vadd.f32 %v1020, %v1021
    %v1023 = vrot.slane %v1022, 2
    %v1024 = vadd.f32 %v1022, %v1023
    %v1025 = vrot.slane %v1024, 1
    %v1026 = vadd.f32 %v1024, %v1025
    %v1027 = vmul.f32 %v1026, %v537
    %v1028 = vsub.f32 %v1013, %v1027
    %v1029 = vsub.f32 %v1014, %v1027
    %v1030 = vsub.f32 %v1015, %v1027
    %v1031 = vmul.f32 %v1028, %v1028
    %v1032 = vmul.f32 %v1029, %v1029
    %v1033 = vmul.f32 %v1030, %v1030
    %v1034 = vsel %vm245, %v1031, 0.0
    %v1035 = vsel %vm245, %v1032, 0.0
    %v1036 = vadd.f32 %v1034, %v1035
    %v1037 = vsel %vm245, %v1033, 0.0
    %v1038 = vadd.f32 %v1036, %v1037
    %v1039 = vrot.slane %v1038, 4
    %v1040 = vadd.f32 %v1038, %v1039
    %v1041 = vrot.slane %v1040, 2
    %v1042 = vadd.f32 %v1040, %v1041
    %v1043 = vrot.slane %v1042, 1
    %v1044 = vadd.f32 %v1042, %v1043
    %v1045 = vmul.f32 %v1044, %v537
    %v1046 = vadd.f32 %v1045, 1e-05
    %v1047 = vrsqrt.pop %v1046
    %v1048 = vmul.f32 %v1028, %v1047
    %v1049 = vmul.f32 %v1029, %v1047
    %v1050 = vmul.f32 %v1030, %v1047
    %v1051 = vlaneseq
    %v1052 = vshrl.u32 %v1051, 7
    %v1053 = vsub.s32 4, %v1052
    %v1054 = vrot.slane %v51, %v1053
    %v1055 = vmul.f32 %v1048, %v1054
    %v1056 = vmul.f32 %v1049, %v1054
    %v1057 = vmul.f32 %v1050, %v1054
    %v1058 = vlaneseq
    %v1059 = vshrl.u32 %v1058, 7
    %v1060 = vsub.s32 5, %v1059
    %v1061 = vrot.slane %v51, %v1060
    %v1062 = vadd.f32 %v1055, %v1061
    %v1063 = vadd.f32 %v1056, %v1061
    %v1064 = vadd.f32 %v1057, %v1061
    %vm1065 = vcmp.ge.f32.partialorder %v1062, 0.0
    %vm1066 = vcmp.ge.f32.partialorder %v1063, 0.0
    %vm1067 = vcmp.ge.f32.partialorder %v1064, 0.0
    %v1068 = vmul.f32 %v1062, 0.01
    %v1069 = vmul.f32 %v1063, 0.01
    %v1070 = vmul.f32 %v1064, 0.01
    %v1071 = vsel %vm1065, %v1062, %v1068
    %v1072 = vsel %vm1066, %v1063, %v1069
    %v1073 = vsel %vm1067, %v1064, %v1070
    %v1074 = vld [vmem:[%s3] sm:$0x3]
    %v1076 = vsel %vm62, %v1074, 0
    %1078 = vmatprep.subr.mxu0 0.0
    %1079 = vmatpush1.msra.mxu0 0.0
    %1080 = vmatprep.subr.mxu0 0.0
    %1081 = vmatpush1.msra.mxu0 0.0
    %1082 = vmatprep.subr.mxu0 0.0
    %1083 = vmatpush1.msra.mxu0 0.0
    %1084 = vmatprep.subr.mxu0 0.0
    %1085 = vmatpush1.msra.mxu0 0.0
    %1086 = vmatprep.subr.mxu0 0.0
    %1087 = vmatpush1.msra.mxu0 0.0
    %1088 = vmatprep.subr.mxu0 0.0
    %1089 = vmatpush1.msra.mxu0 0.0
    %1090 = vmatprep.subr.mxu0 0.0
    %1091 = vmatpush1.msra.mxu0 0.0
    %1092 = vmatprep.subr.mxu0 0.0
    %1093 = vmatpush1.msra.mxu0 0.0
    %1094 = vmatprep.subr.mxu0 0.0
    %1095 = vmatpush1.msra.mxu0 0.0
    %1096 = vmatprep.subr.mxu0 0.0
    %1097 = vmatpush1.msra.mxu0 0.0
    %1098 = vmatprep.subr.mxu0 0.0
    %1099 = vmatpush1.msra.mxu0 0.0
    %1100 = vmatprep.subr.mxu0 0.0
    %1101 = vmatpush1.msra.mxu0 0.0
    %1102 = vmatprep.subr.mxu0 0.0
    %1103 = vmatpush1.msra.mxu0 0.0
    %1104 = vmatprep.subr.mxu0 0.0
    %1105 = vmatpush1.msra.mxu0 %v1073
    %1106 = vmatprep.subr.mxu0 0.0
    %1107 = vmatpush1.msra.mxu0 %v1072
    %1108 = vmatprep.subr.mxu0 0.0
    %1109 = vmatpush1.msra.mxu0 %v1071
    %1110 = vmatprep.subr.mxu0 0.0
    %1111 = vmatpush2.msra.mxu0 0.0
    %1112 = vmatprep.subr.mxu0 0.0
    %1113 = vmatpush2.msra.mxu0 0.0
    %1114 = vmatprep.subr.mxu0 0.0
    %1115 = vmatpush2.msra.mxu0 0.0
    %1116 = vmatprep.subr.mxu0 0.0
    %1117 = vmatpush2.msra.mxu0 0.0
    %1118 = vmatprep.subr.mxu0 0.0
    %1119 = vmatpush2.msra.mxu0 0.0
    %1120 = vmatprep.subr.mxu0 0.0
    %1121 = vmatpush2.msra.mxu0 0.0
    %1122 = vmatprep.subr.mxu0 0.0
    %1123 = vmatpush2.msra.mxu0 0.0
    %1124 = vmatprep.subr.mxu0 0.0
    %1125 = vmatpush2.msra.mxu0 0.0
    %1126 = vmatprep.subr.mxu0 0.0
    %1127 = vmatpush2.msra.mxu0 0.0
    %1128 = vmatprep.subr.mxu0 0.0
    %1129 = vmatpush2.msra.mxu0 0.0
    %1130 = vmatprep.subr.mxu0 0.0
    %1131 = vmatpush2.msra.mxu0 0.0
    %1132 = vmatprep.subr.mxu0 0.0
    %1133 = vmatpush2.msra.mxu0 0.0
    %1134 = vmatprep.subr.mxu0 0.0
    %1135 = vmatpush2.msra.mxu0 0.0
    %1136 = vmatprep.subr.mxu0 0.0
    %1137 = vmatpush2.msra.mxu0 0.0
    %1138 = vmatprep.subr.mxu0 0.0
    %1139 = vmatpush2.msra.mxu0 0.0
    %1140 = vmatprep.subr.mxu0 0.0
    %1141 = vmatpush2.msra.mxu0 0.0
    %1142 = vmatprep.mubr.f32.mxu0 0.0
    %1143 = vmatmul.mubr.f32.gmra.mxu0 %v1076
    %v1144 = vpop.f32.mrf.mxu0
    %v1145 = vadd.f32 0.0, %v1144
    %v1146 = vpop.f32.mrf.mxu0
    %1147 = vdwg.mxu0
    %v1148 = vld [vmem:[%s4] sm:$0xff]
    %v1149 = vld [vmem:[%s4 + $0x8] sm:$0xff]
    %v1150 = vld [vmem:[%s4 + $0x10] sm:$0xf]
    %v1151 = vld [vmem:[%s5] sm:$0xff]
    %v1152 = vld [vmem:[%s5 + $0x8] sm:$0xff]
    %v1153 = vld [vmem:[%s5 + $0x10] sm:$0xf]
    %v1154 = vld [vmem:[%s6] sm:$0xff]
    %v1155 = vld [vmem:[%s6 + $0x8] sm:$0xff]
    %v1156 = vld [vmem:[%s6 + $0x10] sm:$0xf]
    %vm1157 = vcmask 162816
    %v1159 = vsel %vm1157, %v1148, 0
    %v1162 = vsel %vm1157, %v1149, 0
    %v1165 = vsel %vm1157, %v1150, 0
    %vm1167 = vcmask 1043456
    %v1169 = vsel %vm1167, %v1156, 0
    %1171 = vmatprep.subr.mxu0 0.0
    %1172 = vmatpush1.msra.mxu0 0.0
    %1173 = vmatprep.subr.mxu0 0.0
    %1174 = vmatpush1.msra.mxu0 0.0
    %1175 = vmatprep.subr.mxu0 0.0
    %1176 = vmatpush1.msra.mxu0 0.0
    %1177 = vmatprep.subr.mxu0 0.0
    %1178 = vmatpush1.msra.mxu0 0.0
    %1179 = vmatprep.subr.mxu0 0.0
    %1180 = vmatpush1.msra.mxu0 0.0
    %1181 = vmatprep.subr.mxu0 0.0
    %1182 = vmatpush1.msra.mxu0 0.0
    %1183 = vmatprep.subr.mxu0 0.0
    %1184 = vmatpush1.msra.mxu0 0.0
    %1185 = vmatprep.subr.mxu0 0.0
    %1186 = vmatpush1.msra.mxu0 0.0
    %1187 = vmatprep.subr.mxu0 0.0
    %1188 = vmatpush1.msra.mxu0 0.0
    %1189 = vmatprep.subr.mxu0 0.0
    %1190 = vmatpush1.msra.mxu0 0.0
    %1191 = vmatprep.subr.mxu0 0.0
    %1192 = vmatpush1.msra.mxu0 0.0
    %1193 = vmatprep.subr.mxu0 0.0
    %1194 = vmatpush1.msra.mxu0 0.0
    %1195 = vmatprep.subr.mxu0 0.0
    %1196 = vmatpush1.msra.mxu0 0.0
    %1197 = vmatprep.subr.mxu0 0.0
    %1198 = vmatpush1.msra.mxu0 %v1169
    %1199 = vmatprep.subr.mxu0 0.0
    %1200 = vmatpush1.msra.mxu0 %v1155
    %1201 = vmatprep.subr.mxu0 0.0
    %1202 = vmatpush1.msra.mxu0 %v1154
    %1203 = vmatprep.subr.mxu0 0.0
    %1204 = vmatpush2.msra.mxu0 0.0
    %1205 = vmatprep.subr.mxu0 0.0
    %1206 = vmatpush2.msra.mxu0 0.0
    %1207 = vmatprep.subr.mxu0 0.0
    %1208 = vmatpush2.msra.mxu0 0.0
    %1209 = vmatprep.subr.mxu0 0.0
    %1210 = vmatpush2.msra.mxu0 0.0
    %1211 = vmatprep.subr.mxu0 0.0
    %1212 = vmatpush2.msra.mxu0 0.0
    %1213 = vmatprep.subr.mxu0 0.0
    %1214 = vmatpush2.msra.mxu0 0.0
    %1215 = vmatprep.subr.mxu0 0.0
    %1216 = vmatpush2.msra.mxu0 0.0
    %1217 = vmatprep.subr.mxu0 0.0
    %1218 = vmatpush2.msra.mxu0 0.0
    %1219 = vmatprep.subr.mxu0 0.0
    %1220 = vmatpush2.msra.mxu0 0.0
    %1221 = vmatprep.subr.mxu0 0.0
    %1222 = vmatpush2.msra.mxu0 0.0
    %1223 = vmatprep.subr.mxu0 0.0
    %1224 = vmatpush2.msra.mxu0 0.0
    %1225 = vmatprep.subr.mxu0 0.0
    %1226 = vmatpush2.msra.mxu0 0.0
    %1227 = vmatprep.subr.mxu0 0.0
    %1228 = vmatpush2.msra.mxu0 0.0
    %1229 = vmatprep.subr.mxu0 0.0
    %1230 = vmatpush2.msra.mxu0 0.0
    %1231 = vmatprep.subr.mxu0 0.0
    %1232 = vmatpush2.msra.mxu0 0.0
    %1233 = vmatprep.subr.mxu0 0.0
    %1234 = vmatpush2.msra.mxu0 0.0
    %1235 = vmatprep.mubr.f32.mxu0 0.0
    %1236 = vmatmul.mubr.f32.gmra.mxu0 %v1159
    %v1237 = vpop.f32.mrf.mxu0
    %v1238 = vadd.f32 0.0, %v1237
    %v1239 = vpop.f32.mrf.mxu0
    %1240 = vmatprep.mubr.f32.mxu0 0.0
    %1241 = vmatmul.mubr.f32.gmra.mxu0 %v1162
    %v1242 = vpop.f32.mrf.mxu0
    %v1243 = vadd.f32 0.0, %v1242
    %v1244 = vpop.f32.mrf.mxu0
    %1245 = vmatprep.mubr.f32.mxu0 0.0
    %1246 = vmatmul.mubr.f32.gmra.mxu0 %v1165
    %v1247 = vpop.f32.mrf.mxu0
    %v1248 = vadd.f32 0.0, %v1247
    %v1249 = vpop.f32.mrf.mxu0
    %1250 = vdwg.mxu0
    %v1252 = vsel %vm1157, %v1151, 0
    %v1255 = vsel %vm1157, %v1152, 0
    %v1258 = vsel %vm1157, %v1153, 0
    %1260 = vmatprep.subr.mxu0 0.0
    %1261 = vmatpush1.msra.mxu0 0.0
    %1262 = vmatprep.subr.mxu0 0.0
    %1263 = vmatpush1.msra.mxu0 0.0
    %1264 = vmatprep.subr.mxu0 0.0
    %1265 = vmatpush1.msra.mxu0 0.0
    %1266 = vmatprep.subr.mxu0 0.0
    %1267 = vmatpush1.msra.mxu0 0.0
    %1268 = vmatprep.subr.mxu0 0.0
    %1269 = vmatpush1.msra.mxu0 0.0
    %1270 = vmatprep.subr.mxu0 0.0
    %1271 = vmatpush1.msra.mxu0 0.0
    %1272 = vmatprep.subr.mxu0 0.0
    %1273 = vmatpush1.msra.mxu0 0.0
    %1274 = vmatprep.subr.mxu0 0.0
    %1275 = vmatpush1.msra.mxu0 0.0
    %1276 = vmatprep.subr.mxu0 0.0
    %1277 = vmatpush1.msra.mxu0 0.0
    %1278 = vmatprep.subr.mxu0 0.0
    %1279 = vmatpush1.msra.mxu0 0.0
    %1280 = vmatprep.subr.mxu0 0.0
    %1281 = vmatpush1.msra.mxu0 0.0
    %1282 = vmatprep.subr.mxu0 0.0
    %1283 = vmatpush1.msra.mxu0 0.0
    %1284 = vmatprep.subr.mxu0 0.0
    %1285 = vmatpush1.msra.mxu0 0.0
    %1286 = vmatprep.subr.mxu0 0.0
    %1287 = vmatpush1.msra.mxu0 %v1169
    %1288 = vmatprep.subr.mxu0 0.0
    %1289 = vmatpush1.msra.mxu0 %v1155
    %1290 = vmatprep.subr.mxu0 0.0
    %1291 = vmatpush1.msra.mxu0 %v1154
    %1292 = vmatprep.subr.mxu0 0.0
    %1293 = vmatpush2.msra.mxu0 0.0
    %1294 = vmatprep.subr.mxu0 0.0
    %1295 = vmatpush2.msra.mxu0 0.0
    %1296 = vmatprep.subr.mxu0 0.0
    %1297 = vmatpush2.msra.mxu0 0.0
    %1298 = vmatprep.subr.mxu0 0.0
    %1299 = vmatpush2.msra.mxu0 0.0
    %1300 = vmatprep.subr.mxu0 0.0
    %1301 = vmatpush2.msra.mxu0 0.0
    %1302 = vmatprep.subr.mxu0 0.0
    %1303 = vmatpush2.msra.mxu0 0.0
    %1304 = vmatprep.subr.mxu0 0.0
    %1305 = vmatpush2.msra.mxu0 0.0
    %1306 = vmatprep.subr.mxu0 0.0
    %1307 = vmatpush2.msra.mxu0 0.0
    %1308 = vmatprep.subr.mxu0 0.0
    %1309 = vmatpush2.msra.mxu0 0.0
    %1310 = vmatprep.subr.mxu0 0.0
    %1311 = vmatpush2.msra.mxu0 0.0
    %1312 = vmatprep.subr.mxu0 0.0
    %1313 = vmatpush2.msra.mxu0 0.0
    %1314 = vmatprep.subr.mxu0 0.0
    %1315 = vmatpush2.msra.mxu0 0.0
    %1316 = vmatprep.subr.mxu0 0.0
    %1317 = vmatpush2.msra.mxu0 0.0
    %1318 = vmatprep.subr.mxu0 0.0
    %1319 = vmatpush2.msra.mxu0 0.0
    %1320 = vmatprep.subr.mxu0 0.0
    %1321 = vmatpush2.msra.mxu0 0.0
    %1322 = vmatprep.subr.mxu0 0.0
    %1323 = vmatpush2.msra.mxu0 0.0
    %1324 = vmatprep.mubr.f32.mxu0 0.0
    %1325 = vmatmul.mubr.f32.gmra.mxu0 %v1252
    %v1326 = vpop.f32.mrf.mxu0
    %v1327 = vadd.f32 0.0, %v1326
    %v1328 = vpop.f32.mrf.mxu0
    %1329 = vmatprep.mubr.f32.mxu0 0.0
    %1330 = vmatmul.mubr.f32.gmra.mxu0 %v1255
    %v1331 = vpop.f32.mrf.mxu0
    %v1332 = vadd.f32 0.0, %v1331
    %v1333 = vpop.f32.mrf.mxu0
    %1334 = vmatprep.mubr.f32.mxu0 0.0
    %1335 = vmatmul.mubr.f32.gmra.mxu0 %v1258
    %v1336 = vpop.f32.mrf.mxu0
    %v1337 = vadd.f32 0.0, %v1336
    %v1338 = vpop.f32.mrf.mxu0
    %1339 = vdwg.mxu0
    %v1340 = vld [vmem:[%s10] sm:$0xff]
    %v1341 = vld [vmem:[%s10 + $0x8] sm:$0xff]
    %v1342 = vld [vmem:[%s10 + $0x10] sm:$0xff]
    %v1343 = vld [vmem:[%s10 + $0x18] sm:$0xff]
    %v1345 = vsel %vm245, %v1327, 0
    %v1348 = vsel %vm245, %v1332, 0
    %v1351 = vsel %vm245, %v1337, 0
    %1353 = vmatprep.subr.mxu0 0.0
    %1354 = vmatpush1.msra.mxu0 0.0
    %1355 = vmatprep.subr.mxu0 0.0
    %1356 = vmatpush1.msra.mxu0 0.0
    %1357 = vmatprep.subr.mxu0 0.0
    %1358 = vmatpush1.msra.mxu0 0.0
    %1359 = vmatprep.subr.mxu0 0.0
    %1360 = vmatpush1.msra.mxu0 0.0
    %1361 = vmatprep.subr.mxu0 0.0
    %1362 = vmatpush1.msra.mxu0 0.0
    %1363 = vmatprep.subr.mxu0 0.0
    %1364 = vmatpush1.msra.mxu0 0.0
    %1365 = vmatprep.subr.mxu0 0.0
    %1366 = vmatpush1.msra.mxu0 0.0
    %1367 = vmatprep.subr.mxu0 0.0
    %1368 = vmatpush1.msra.mxu0 0.0
    %1369 = vmatprep.subr.mxu0 0.0
    %1370 = vmatpush1.msra.mxu0 0.0
    %1371 = vmatprep.subr.mxu0 0.0
    %1372 = vmatpush1.msra.mxu0 0.0
    %1373 = vmatprep.subr.mxu0 0.0
    %1374 = vmatpush1.msra.mxu0 0.0
    %1375 = vmatprep.subr.mxu0 0.0
    %1376 = vmatpush1.msra.mxu0 0.0
    %1377 = vmatprep.subr.mxu0 0.0
    %1378 = vmatpush1.msra.mxu0 0.0
    %1379 = vmatprep.subr.mxu0 0.0
    %1380 = vmatpush1.msra.mxu0 0.0
    %1381 = vmatprep.subr.mxu0 0.0
    %1382 = vmatpush1.msra.mxu0 %v1343
    %1383 = vmatprep.subr.mxu0 0.0
    %1384 = vmatpush1.msra.mxu0 %v1342
    %1385 = vmatprep.subr.mxu0 0.0
    %1386 = vmatpush2.msra.mxu0 0.0
    %1387 = vmatprep.subr.mxu0 0.0
    %1388 = vmatpush2.msra.mxu0 0.0
    %1389 = vmatprep.subr.mxu0 0.0
    %1390 = vmatpush2.msra.mxu0 0.0
    %1391 = vmatprep.subr.mxu0 0.0
    %1392 = vmatpush2.msra.mxu0 0.0
    %1393 = vmatprep.subr.mxu0 0.0
    %1394 = vmatpush2.msra.mxu0 0.0
    %1395 = vmatprep.subr.mxu0 0.0
    %1396 = vmatpush2.msra.mxu0 0.0
    %1397 = vmatprep.subr.mxu0 0.0
    %1398 = vmatpush2.msra.mxu0 0.0
    %1399 = vmatprep.subr.mxu0 0.0
    %1400 = vmatpush2.msra.mxu0 0.0
    %1401 = vmatprep.subr.mxu0 0.0
    %1402 = vmatpush2.msra.mxu0 0.0
    %1403 = vmatprep.subr.mxu0 0.0
    %1404 = vmatpush2.msra.mxu0 0.0
    %1405 = vmatprep.subr.mxu0 0.0
    %1406 = vmatpush2.msra.mxu0 0.0
    %1407 = vmatprep.subr.mxu0 0.0
    %1408 = vmatpush2.msra.mxu0 0.0
    %1409 = vmatprep.subr.mxu0 0.0
    %1410 = vmatpush2.msra.mxu0 0.0
    %1411 = vmatprep.subr.mxu0 0.0
    %1412 = vmatpush2.msra.mxu0 0.0
    %1413 = vmatprep.subr.mxu0 0.0
    %1414 = vmatpush2.msra.mxu0 0.0
    %1415 = vmatprep.subr.mxu0 0.0
    %1416 = vmatpush2.msra.mxu0 0.0
    %1417 = vmatprep.mubr.f32.mxu0 0.0
    %1418 = vmatmul.mubr.f32.gmra.mxu0 %v1345
    %v1419 = vpop.f32.mrf.mxu0
    %v1420 = vadd.f32 0.0, %v1419
    %v1421 = vpop.f32.mrf.mxu0
    %1422 = vmatprep.mubr.f32.mxu0 0.0
    %1423 = vmatmul.mubr.f32.gmra.mxu0 %v1348
    %v1424 = vpop.f32.mrf.mxu0
    %v1425 = vadd.f32 0.0, %v1424
    %v1426 = vpop.f32.mrf.mxu0
    %1427 = vmatprep.mubr.f32.mxu0 0.0
    %1428 = vmatmul.mubr.f32.gmra.mxu0 %v1351
    %v1429 = vpop.f32.mrf.mxu0
    %v1430 = vadd.f32 0.0, %v1429
    %v1431 = vpop.f32.mrf.mxu0
    %1432 = vdwg.mxu0
    %v1434 = vsel %vm245, %v1238, 0
    %v1437 = vsel %vm245, %v1243, 0
    %v1440 = vsel %vm245, %v1248, 0
    %1442 = vmatprep.subr.mxu0 0.0
    %1443 = vmatpush1.msra.mxu0 0.0
    %1444 = vmatprep.subr.mxu0 0.0
    %1445 = vmatpush1.msra.mxu0 0.0
    %1446 = vmatprep.subr.mxu0 0.0
    %1447 = vmatpush1.msra.mxu0 0.0
    %1448 = vmatprep.subr.mxu0 0.0
    %1449 = vmatpush1.msra.mxu0 0.0
    %1450 = vmatprep.subr.mxu0 0.0
    %1451 = vmatpush1.msra.mxu0 0.0
    %1452 = vmatprep.subr.mxu0 0.0
    %1453 = vmatpush1.msra.mxu0 0.0
    %1454 = vmatprep.subr.mxu0 0.0
    %1455 = vmatpush1.msra.mxu0 0.0
    %1456 = vmatprep.subr.mxu0 0.0
    %1457 = vmatpush1.msra.mxu0 0.0
    %1458 = vmatprep.subr.mxu0 0.0
    %1459 = vmatpush1.msra.mxu0 0.0
    %1460 = vmatprep.subr.mxu0 0.0
    %1461 = vmatpush1.msra.mxu0 0.0
    %1462 = vmatprep.subr.mxu0 0.0
    %1463 = vmatpush1.msra.mxu0 0.0
    %1464 = vmatprep.subr.mxu0 0.0
    %1465 = vmatpush1.msra.mxu0 0.0
    %1466 = vmatprep.subr.mxu0 0.0
    %1467 = vmatpush1.msra.mxu0 0.0
    %1468 = vmatprep.subr.mxu0 0.0
    %1469 = vmatpush1.msra.mxu0 0.0
    %1470 = vmatprep.subr.mxu0 0.0
    %1471 = vmatpush1.msra.mxu0 %v1341
    %1472 = vmatprep.subr.mxu0 0.0
    %1473 = vmatpush1.msra.mxu0 %v1340
    %1474 = vmatprep.subr.mxu0 0.0
    %1475 = vmatpush2.msra.mxu0 0.0
    %1476 = vmatprep.subr.mxu0 0.0
    %1477 = vmatpush2.msra.mxu0 0.0
    %1478 = vmatprep.subr.mxu0 0.0
    %1479 = vmatpush2.msra.mxu0 0.0
    %1480 = vmatprep.subr.mxu0 0.0
    %1481 = vmatpush2.msra.mxu0 0.0
    %1482 = vmatprep.subr.mxu0 0.0
    %1483 = vmatpush2.msra.mxu0 0.0
    %1484 = vmatprep.subr.mxu0 0.0
    %1485 = vmatpush2.msra.mxu0 0.0
    %1486 = vmatprep.subr.mxu0 0.0
    %1487 = vmatpush2.msra.mxu0 0.0
    %1488 = vmatprep.subr.mxu0 0.0
    %1489 = vmatpush2.msra.mxu0 0.0
    %1490 = vmatprep.subr.mxu0 0.0
    %1491 = vmatpush2.msra.mxu0 0.0
    %1492 = vmatprep.subr.mxu0 0.0
    %1493 = vmatpush2.msra.mxu0 0.0
    %1494 = vmatprep.subr.mxu0 0.0
    %1495 = vmatpush2.msra.mxu0 0.0
    %1496 = vmatprep.subr.mxu0 0.0
    %1497 = vmatpush2.msra.mxu0 0.0
    %1498 = vmatprep.subr.mxu0 0.0
    %1499 = vmatpush2.msra.mxu0 0.0
    %1500 = vmatprep.subr.mxu0 0.0
    %1501 = vmatpush2.msra.mxu0 0.0
    %1502 = vmatprep.subr.mxu0 0.0
    %1503 = vmatpush2.msra.mxu0 0.0
    %1504 = vmatprep.subr.mxu0 0.0
    %1505 = vmatpush2.msra.mxu0 0.0
    %1506 = vmatprep.mubr.f32.mxu0 0.0
    %1507 = vmatmul.mubr.f32.gmra.mxu0 %v1434
    %v1508 = vpop.f32.mrf.mxu0
    %v1509 = vadd.f32 %v1420, %v1508
    %v1510 = vpop.f32.mrf.mxu0
    %1511 = vmatprep.mubr.f32.mxu0 0.0
    %1512 = vmatmul.mubr.f32.gmra.mxu0 %v1437
    %v1513 = vpop.f32.mrf.mxu0
    %v1514 = vadd.f32 %v1425, %v1513
    %v1515 = vpop.f32.mrf.mxu0
    %1516 = vmatprep.mubr.f32.mxu0 0.0
    %1517 = vmatmul.mubr.f32.gmra.mxu0 %v1440
    %v1518 = vpop.f32.mrf.mxu0
    %v1519 = vadd.f32 %v1430, %v1518
    %v1520 = vpop.f32.mrf.mxu0
    %1521 = vdwg.mxu0
    %v1522 = vld [vmem:[%s10 + $0x20] sm:$0xff]
    %v1523 = vld [vmem:[%s10 + $0x28] sm:$0xff]
    %v1525 = vsel %vm245, %v1154, 0
    %v1528 = vsel %vm245, %v1155, 0
    %v1530 = vsel %vm245, %v1156, 0
    %1532 = vmatprep.subr.mxu0 0.0
    %1533 = vmatpush1.msra.mxu0 0.0
    %1534 = vmatprep.subr.mxu0 0.0
    %1535 = vmatpush1.msra.mxu0 0.0
    %1536 = vmatprep.subr.mxu0 0.0
    %1537 = vmatpush1.msra.mxu0 0.0
    %1538 = vmatprep.subr.mxu0 0.0
    %1539 = vmatpush1.msra.mxu0 0.0
    %1540 = vmatprep.subr.mxu0 0.0
    %1541 = vmatpush1.msra.mxu0 0.0
    %1542 = vmatprep.subr.mxu0 0.0
    %1543 = vmatpush1.msra.mxu0 0.0
    %1544 = vmatprep.subr.mxu0 0.0
    %1545 = vmatpush1.msra.mxu0 0.0
    %1546 = vmatprep.subr.mxu0 0.0
    %1547 = vmatpush1.msra.mxu0 0.0
    %1548 = vmatprep.subr.mxu0 0.0
    %1549 = vmatpush1.msra.mxu0 0.0
    %1550 = vmatprep.subr.mxu0 0.0
    %1551 = vmatpush1.msra.mxu0 0.0
    %1552 = vmatprep.subr.mxu0 0.0
    %1553 = vmatpush1.msra.mxu0 0.0
    %1554 = vmatprep.subr.mxu0 0.0
    %1555 = vmatpush1.msra.mxu0 0.0
    %1556 = vmatprep.subr.mxu0 0.0
    %1557 = vmatpush1.msra.mxu0 0.0
    %1558 = vmatprep.subr.mxu0 0.0
    %1559 = vmatpush1.msra.mxu0 0.0
    %1560 = vmatprep.subr.mxu0 0.0
    %1561 = vmatpush1.msra.mxu0 %v1523
    %1562 = vmatprep.subr.mxu0 0.0
    %1563 = vmatpush1.msra.mxu0 %v1522
    %1564 = vmatprep.subr.mxu0 0.0
    %1565 = vmatpush2.msra.mxu0 0.0
    %1566 = vmatprep.subr.mxu0 0.0
    %1567 = vmatpush2.msra.mxu0 0.0
    %1568 = vmatprep.subr.mxu0 0.0
    %1569 = vmatpush2.msra.mxu0 0.0
    %1570 = vmatprep.subr.mxu0 0.0
    %1571 = vmatpush2.msra.mxu0 0.0
    %1572 = vmatprep.subr.mxu0 0.0
    %1573 = vmatpush2.msra.mxu0 0.0
    %1574 = vmatprep.subr.mxu0 0.0
    %1575 = vmatpush2.msra.mxu0 0.0
    %1576 = vmatprep.subr.mxu0 0.0
    %1577 = vmatpush2.msra.mxu0 0.0
    %1578 = vmatprep.subr.mxu0 0.0
    %1579 = vmatpush2.msra.mxu0 0.0
    %1580 = vmatprep.subr.mxu0 0.0
    %1581 = vmatpush2.msra.mxu0 0.0
    %1582 = vmatprep.subr.mxu0 0.0
    %1583 = vmatpush2.msra.mxu0 0.0
    %1584 = vmatprep.subr.mxu0 0.0
    %1585 = vmatpush2.msra.mxu0 0.0
    %1586 = vmatprep.subr.mxu0 0.0
    %1587 = vmatpush2.msra.mxu0 0.0
    %1588 = vmatprep.subr.mxu0 0.0
    %1589 = vmatpush2.msra.mxu0 0.0
    %1590 = vmatprep.subr.mxu0 0.0
    %1591 = vmatpush2.msra.mxu0 0.0
    %1592 = vmatprep.subr.mxu0 0.0
    %1593 = vmatpush2.msra.mxu0 0.0
    %1594 = vmatprep.subr.mxu0 0.0
    %1595 = vmatpush2.msra.mxu0 0.0
    %1596 = vmatprep.mubr.f32.mxu0 0.0
    %1597 = vmatmul.mubr.f32.gmra.mxu0 %v1525
    %v1598 = vpop.f32.mrf.mxu0
    %v1599 = vadd.f32 0.0, %v1598
    %v1600 = vpop.f32.mrf.mxu0
    %1601 = vmatprep.mubr.f32.mxu0 0.0
    %1602 = vmatmul.mubr.f32.gmra.mxu0 %v1528
    %v1603 = vpop.f32.mrf.mxu0
    %v1604 = vadd.f32 0.0, %v1603
    %v1605 = vpop.f32.mrf.mxu0
    %1606 = vmatprep.mubr.f32.mxu0 0.0
    %1607 = vmatmul.mubr.f32.gmra.mxu0 %v1530
    %v1608 = vpop.f32.mrf.mxu0
    %v1609 = vadd.f32 0.0, %v1608
    %v1610 = vpop.f32.mrf.mxu0
    %1611 = vdwg.mxu0
    %v1612 = vadd.f32 %v1509, %v1599
    %v1613 = vadd.f32 %v1514, %v1604
    %v1614 = vadd.f32 %v1519, %v1609
    %v1615 = vlaneseq
    %v1616 = vshrl.u32 %v1615, 7
    %v1617 = vsub.s32 6, %v1616
    %v1618 = vrot.slane %v51, %v1617
    %v1619 = vadd.f32 %v1612, %v1618
    %v1620 = vadd.f32 %v1613, %v1618
    %v1621 = vadd.f32 %v1614, %v1618
    %v1622 = vsel %vm525, %v1619, 0.0
    %v1623 = vsel %vm525, %v1620, 0.0
    %v1624 = vadd.f32 %v1622, %v1623
    %vm1625 = vcmask 257024
    %v1626 = vsel %vm1625, %v1621, 0.0
    %v1627 = vadd.f32 %v1624, %v1626
    %v1628 = vrot.slane %v1627, 4
    %v1629 = vadd.f32 %v1627, %v1628
    %v1630 = vrot.slane %v1629, 2
    %v1631 = vadd.f32 %v1629, %v1630
    %v1632 = vrot.slane %v1631, 1
    %v1633 = vadd.f32 %v1631, %v1632
    %v1634 = vrcp.pop 20.0
    %v1635 = vmul.f32 %v1633, %v1634
    %v1636 = vsub.f32 %v1619, %v1635
    %v1637 = vsub.f32 %v1620, %v1635
    %v1638 = vsub.f32 %v1621, %v1635
    %v1639 = vmul.f32 %v1636, %v1636
    %v1640 = vmul.f32 %v1637, %v1637
    %v1641 = vmul.f32 %v1638, %v1638
    %v1642 = vsel %vm525, %v1639, 0.0
    %v1643 = vsel %vm525, %v1640, 0.0
    %v1644 = vadd.f32 %v1642, %v1643
    %v1645 = vsel %vm1625, %v1641, 0.0
    %v1646 = vadd.f32 %v1644, %v1645
    %v1647 = vrot.slane %v1646, 4
    %v1648 = vadd.f32 %v1646, %v1647
    %v1649 = vrot.slane %v1648, 2
    %v1650 = vadd.f32 %v1648, %v1649
    %v1651 = vrot.slane %v1650, 1
    %v1652 = vadd.f32 %v1650, %v1651
    %v1653 = vmul.f32 %v1652, %v1634
    %v1654 = vadd.f32 %v1653, 1e-05
    %v1655 = vrsqrt.pop %v1654
    %v1656 = vmul.f32 %v1636, %v1655
    %v1657 = vmul.f32 %v1637, %v1655
    %v1658 = vmul.f32 %v1638, %v1655
    %v1659 = vlaneseq
    %v1660 = vshrl.u32 %v1659, 7
    %v1661 = vsub.s32 7, %v1660
    %v1662 = vrot.slane %v51, %v1661
    %v1663 = vmul.f32 %v1656, %v1662
    %v1664 = vmul.f32 %v1657, %v1662
    %v1665 = vmul.f32 %v1658, %v1662
    %v1666 = vlaneseq
    %v1667 = vshrl.u32 %v1666, 7
    %v1668 = vsub.s32 0, %v1667
    %v1669 = vrot.slane %v52, %v1668
    %v1670 = vadd.f32 %v1663, %v1669
    %v1671 = vadd.f32 %v1664, %v1669
    %v1672 = vadd.f32 %v1665, %v1669
    %vm1673 = vcmp.ge.f32.partialorder %v1670, 0.0
    %vm1674 = vcmp.ge.f32.partialorder %v1671, 0.0
    %vm1675 = vcmp.ge.f32.partialorder %v1672, 0.0
    %v1676 = vmul.f32 %v1670, 0.01
    %v1677 = vmul.f32 %v1671, 0.01
    %v1678 = vmul.f32 %v1672, 0.01
    %v1679 = vsel %vm1673, %v1670, %v1676
    %v1680 = vsel %vm1674, %v1671, %v1677
    %v1681 = vsel %vm1675, %v1672, %v1678
    %v1682 = vld [vmem:[%s11] sm:$0xff]
    %v1683 = vld [vmem:[%s11 + $0x8] sm:$0xff]
    %v1684 = vld [vmem:[%s11 + $0x10] sm:$0xff]
    %v1685 = vld [vmem:[%s11 + $0x18] sm:$0xff]
    %v1687 = vsel %vm525, %v1679, 0
    %v1690 = vsel %vm525, %v1680, 0
    %v1693 = vsel %vm525, %v1681, 0
    %1695 = vmatprep.subr.mxu0 0.0
    %1696 = vmatpush1.msra.mxu0 0.0
    %1697 = vmatprep.subr.mxu0 0.0
    %1698 = vmatpush1.msra.mxu0 0.0
    %1699 = vmatprep.subr.mxu0 0.0
    %1700 = vmatpush1.msra.mxu0 0.0
    %1701 = vmatprep.subr.mxu0 0.0
    %1702 = vmatpush1.msra.mxu0 0.0
    %1703 = vmatprep.subr.mxu0 0.0
    %1704 = vmatpush1.msra.mxu0 0.0
    %1705 = vmatprep.subr.mxu0 0.0
    %1706 = vmatpush1.msra.mxu0 0.0
    %1707 = vmatprep.subr.mxu0 0.0
    %1708 = vmatpush1.msra.mxu0 0.0
    %1709 = vmatprep.subr.mxu0 0.0
    %1710 = vmatpush1.msra.mxu0 0.0
    %1711 = vmatprep.subr.mxu0 0.0
    %1712 = vmatpush1.msra.mxu0 0.0
    %1713 = vmatprep.subr.mxu0 0.0
    %1714 = vmatpush1.msra.mxu0 0.0
    %1715 = vmatprep.subr.mxu0 0.0
    %1716 = vmatpush1.msra.mxu0 0.0
    %1717 = vmatprep.subr.mxu0 0.0
    %1718 = vmatpush1.msra.mxu0 0.0
    %1719 = vmatprep.subr.mxu0 0.0
    %1720 = vmatpush1.msra.mxu0 %v1685
    %1721 = vmatprep.subr.mxu0 0.0
    %1722 = vmatpush1.msra.mxu0 %v1684
    %1723 = vmatprep.subr.mxu0 0.0
    %1724 = vmatpush1.msra.mxu0 %v1683
    %1725 = vmatprep.subr.mxu0 0.0
    %1726 = vmatpush1.msra.mxu0 %v1682
    %1727 = vmatprep.subr.mxu0 0.0
    %1728 = vmatpush2.msra.mxu0 0.0
    %1729 = vmatprep.subr.mxu0 0.0
    %1730 = vmatpush2.msra.mxu0 0.0
    %1731 = vmatprep.subr.mxu0 0.0
    %1732 = vmatpush2.msra.mxu0 0.0
    %1733 = vmatprep.subr.mxu0 0.0
    %1734 = vmatpush2.msra.mxu0 0.0
    %1735 = vmatprep.subr.mxu0 0.0
    %1736 = vmatpush2.msra.mxu0 0.0
    %1737 = vmatprep.subr.mxu0 0.0
    %1738 = vmatpush2.msra.mxu0 0.0
    %1739 = vmatprep.subr.mxu0 0.0
    %1740 = vmatpush2.msra.mxu0 0.0
    %1741 = vmatprep.subr.mxu0 0.0
    %1742 = vmatpush2.msra.mxu0 0.0
    %1743 = vmatprep.subr.mxu0 0.0
    %1744 = vmatpush2.msra.mxu0 0.0
    %1745 = vmatprep.subr.mxu0 0.0
    %1746 = vmatpush2.msra.mxu0 0.0
    %1747 = vmatprep.subr.mxu0 0.0
    %1748 = vmatpush2.msra.mxu0 0.0
    %1749 = vmatprep.subr.mxu0 0.0
    %1750 = vmatpush2.msra.mxu0 0.0
    %1751 = vmatprep.subr.mxu0 0.0
    %1752 = vmatpush2.msra.mxu0 0.0
    %1753 = vmatprep.subr.mxu0 0.0
    %1754 = vmatpush2.msra.mxu0 0.0
    %1755 = vmatprep.subr.mxu0 0.0
    %1756 = vmatpush2.msra.mxu0 0.0
    %1757 = vmatprep.subr.mxu0 0.0
    %1758 = vmatpush2.msra.mxu0 0.0
    %1759 = vmatprep.mubr.f32.mxu0 0.0
    %1760 = vmatmul.mubr.f32.gmra.mxu0 %v1687
    %v1761 = vpop.f32.mrf.mxu0
    %v1762 = vadd.f32 0.0, %v1761
    %v1763 = vpop.f32.mrf.mxu0
    %1764 = vmatprep.mubr.f32.mxu0 0.0
    %1765 = vmatmul.mubr.f32.gmra.mxu0 %v1690
    %v1766 = vpop.f32.mrf.mxu0
    %v1767 = vadd.f32 0.0, %v1766
    %v1768 = vpop.f32.mrf.mxu0
    %1769 = vmatprep.mubr.f32.mxu0 0.0
    %1770 = vmatmul.mubr.f32.gmra.mxu0 %v1693
    %v1771 = vpop.f32.mrf.mxu0
    %v1772 = vadd.f32 0.0, %v1771
    %v1773 = vpop.f32.mrf.mxu0
    %1774 = vdwg.mxu0
    %v1775 = vld [vmem:[%s11 + $0x20] sm:$0xff]
    %v1776 = vld [vmem:[%s11 + $0x28] sm:$0xff]
    %v1777 = vld [vmem:[%s11 + $0x30] sm:$0xff]
    %v1778 = vld [vmem:[%s11 + $0x38] sm:$0xff]
    %1779 = vmatprep.subr.mxu0 0.0
    %1780 = vmatpush1.msra.mxu0 0.0
    %1781 = vmatprep.subr.mxu0 0.0
    %1782 = vmatpush1.msra.mxu0 0.0
    %1783 = vmatprep.subr.mxu0 0.0
    %1784 = vmatpush1.msra.mxu0 0.0
    %1785 = vmatprep.subr.mxu0 0.0
    %1786 = vmatpush1.msra.mxu0 0.0
    %1787 = vmatprep.subr.mxu0 0.0
    %1788 = vmatpush1.msra.mxu0 0.0
    %1789 = vmatprep.subr.mxu0 0.0
    %1790 = vmatpush1.msra.mxu0 0.0
    %1791 = vmatprep.subr.mxu0 0.0
    %1792 = vmatpush1.msra.mxu0 0.0
    %1793 = vmatprep.subr.mxu0 0.0
    %1794 = vmatpush1.msra.mxu0 0.0
    %1795 = vmatprep.subr.mxu0 0.0
    %1796 = vmatpush1.msra.mxu0 0.0
    %1797 = vmatprep.subr.mxu0 0.0
    %1798 = vmatpush1.msra.mxu0 0.0
    %1799 = vmatprep.subr.mxu0 0.0
    %1800 = vmatpush1.msra.mxu0 0.0
    %1801 = vmatprep.subr.mxu0 0.0
    %1802 = vmatpush1.msra.mxu0 0.0
    %1803 = vmatprep.subr.mxu0 0.0
    %1804 = vmatpush1.msra.mxu0 %v1778
    %1805 = vmatprep.subr.mxu0 0.0
    %1806 = vmatpush1.msra.mxu0 %v1777
    %1807 = vmatprep.subr.mxu0 0.0
    %1808 = vmatpush1.msra.mxu0 %v1776
    %1809 = vmatprep.subr.mxu0 0.0
    %1810 = vmatpush1.msra.mxu0 %v1775
    %1811 = vmatprep.subr.mxu0 0.0
    %1812 = vmatpush2.msra.mxu0 0.0
    %1813 = vmatprep.subr.mxu0 0.0
    %1814 = vmatpush2.msra.mxu0 0.0
    %1815 = vmatprep.subr.mxu0 0.0
    %1816 = vmatpush2.msra.mxu0 0.0
    %1817 = vmatprep.subr.mxu0 0.0
    %1818 = vmatpush2.msra.mxu0 0.0
    %1819 = vmatprep.subr.mxu0 0.0
    %1820 = vmatpush2.msra.mxu0 0.0
    %1821 = vmatprep.subr.mxu0 0.0
    %1822 = vmatpush2.msra.mxu0 0.0
    %1823 = vmatprep.subr.mxu0 0.0
    %1824 = vmatpush2.msra.mxu0 0.0
    %1825 = vmatprep.subr.mxu0 0.0
    %1826 = vmatpush2.msra.mxu0 0.0
    %1827 = vmatprep.subr.mxu0 0.0
    %1828 = vmatpush2.msra.mxu0 0.0
    %1829 = vmatprep.subr.mxu0 0.0
    %1830 = vmatpush2.msra.mxu0 0.0
    %1831 = vmatprep.subr.mxu0 0.0
    %1832 = vmatpush2.msra.mxu0 0.0
    %1833 = vmatprep.subr.mxu0 0.0
    %1834 = vmatpush2.msra.mxu0 0.0
    %1835 = vmatprep.subr.mxu0 0.0
    %1836 = vmatpush2.msra.mxu0 0.0
    %1837 = vmatprep.subr.mxu0 0.0
    %1838 = vmatpush2.msra.mxu0 0.0
    %1839 = vmatprep.subr.mxu0 0.0
    %1840 = vmatpush2.msra.mxu0 0.0
    %1841 = vmatprep.subr.mxu0 0.0
    %1842 = vmatpush2.msra.mxu0 0.0
    %1843 = vmatprep.mubr.f32.mxu0 0.0
    %1844 = vmatmul.mubr.f32.gmra.mxu0 %v1687
    %v1845 = vpop.f32.mrf.mxu0
    %v1846 = vadd.f32 0.0, %v1845
    %v1847 = vpop.f32.mrf.mxu0
    %1848 = vmatprep.mubr.f32.mxu0 0.0
    %1849 = vmatmul.mubr.f32.gmra.mxu0 %v1690
    %v1850 = vpop.f32.mrf.mxu0
    %v1851 = vadd.f32 0.0, %v1850
    %v1852 = vpop.f32.mrf.mxu0
    %1853 = vmatprep.mubr.f32.mxu0 0.0
    %1854 = vmatmul.mubr.f32.gmra.mxu0 %v1693
    %v1855 = vpop.f32.mrf.mxu0
    %v1856 = vadd.f32 0.0, %v1855
    %v1857 = vpop.f32.mrf.mxu0
    %1858 = vdwg.mxu0
    %v1859 = vld [vmem:[%s11 + $0x40] sm:$0xff]
    %v1860 = vld [vmem:[%s11 + $0x48] sm:$0xff]
    %v1861 = vld [vmem:[%s11 + $0x50] sm:$0xff]
    %v1862 = vld [vmem:[%s11 + $0x58] sm:$0xff]
    %1863 = vmatprep.subr.mxu0 0.0
    %1864 = vmatpush1.msra.mxu0 0.0
    %1865 = vmatprep.subr.mxu0 0.0
    %1866 = vmatpush1.msra.mxu0 0.0
    %1867 = vmatprep.subr.mxu0 0.0
    %1868 = vmatpush1.msra.mxu0 0.0
    %1869 = vmatprep.subr.mxu0 0.0
    %1870 = vmatpush1.msra.mxu0 0.0
    %1871 = vmatprep.subr.mxu0 0.0
    %1872 = vmatpush1.msra.mxu0 0.0
    %1873 = vmatprep.subr.mxu0 0.0
    %1874 = vmatpush1.msra.mxu0 0.0
    %1875 = vmatprep.subr.mxu0 0.0
    %1876 = vmatpush1.msra.mxu0 0.0
    %1877 = vmatprep.subr.mxu0 0.0
    %1878 = vmatpush1.msra.mxu0 0.0
    %1879 = vmatprep.subr.mxu0 0.0
    %1880 = vmatpush1.msra.mxu0 0.0
    %1881 = vmatprep.subr.mxu0 0.0
    %1882 = vmatpush1.msra.mxu0 0.0
    %1883 = vmatprep.subr.mxu0 0.0
    %1884 = vmatpush1.msra.mxu0 0.0
    %1885 = vmatprep.subr.mxu0 0.0
    %1886 = vmatpush1.msra.mxu0 0.0
    %1887 = vmatprep.subr.mxu0 0.0
    %1888 = vmatpush1.msra.mxu0 %v1862
    %1889 = vmatprep.subr.mxu0 0.0
    %1890 = vmatpush1.msra.mxu0 %v1861
    %1891 = vmatprep.subr.mxu0 0.0
    %1892 = vmatpush1.msra.mxu0 %v1860
    %1893 = vmatprep.subr.mxu0 0.0
    %1894 = vmatpush1.msra.mxu0 %v1859
    %1895 = vmatprep.subr.mxu0 0.0
    %1896 = vmatpush2.msra.mxu0 0.0
    %1897 = vmatprep.subr.mxu0 0.0
    %1898 = vmatpush2.msra.mxu0 0.0
    %1899 = vmatprep.subr.mxu0 0.0
    %1900 = vmatpush2.msra.mxu0 0.0
    %1901 = vmatprep.subr.mxu0 0.0
    %1902 = vmatpush2.msra.mxu0 0.0
    %1903 = vmatprep.subr.mxu0 0.0
    %1904 = vmatpush2.msra.mxu0 0.0
    %1905 = vmatprep.subr.mxu0 0.0
    %1906 = vmatpush2.msra.mxu0 0.0
    %1907 = vmatprep.subr.mxu0 0.0
    %1908 = vmatpush2.msra.mxu0 0.0
    %1909 = vmatprep.subr.mxu0 0.0
    %1910 = vmatpush2.msra.mxu0 0.0
    %1911 = vmatprep.subr.mxu0 0.0
    %1912 = vmatpush2.msra.mxu0 0.0
    %1913 = vmatprep.subr.mxu0 0.0
    %1914 = vmatpush2.msra.mxu0 0.0
    %1915 = vmatprep.subr.mxu0 0.0
    %1916 = vmatpush2.msra.mxu0 0.0
    %1917 = vmatprep.subr.mxu0 0.0
    %1918 = vmatpush2.msra.mxu0 0.0
    %1919 = vmatprep.subr.mxu0 0.0
    %1920 = vmatpush2.msra.mxu0 0.0
    %1921 = vmatprep.subr.mxu0 0.0
    %1922 = vmatpush2.msra.mxu0 0.0
    %1923 = vmatprep.subr.mxu0 0.0
    %1924 = vmatpush2.msra.mxu0 0.0
    %1925 = vmatprep.subr.mxu0 0.0
    %1926 = vmatpush2.msra.mxu0 0.0
    %1927 = vmatprep.mubr.f32.mxu0 0.0
    %1928 = vmatmul.mubr.f32.gmra.mxu0 %v1687
    %v1929 = vpop.f32.mrf.mxu0
    %v1930 = vadd.f32 0.0, %v1929
    %v1931 = vpop.f32.mrf.mxu0
    %1932 = vmatprep.mubr.f32.mxu0 0.0
    %1933 = vmatmul.mubr.f32.gmra.mxu0 %v1690
    %v1934 = vpop.f32.mrf.mxu0
    %v1935 = vadd.f32 0.0, %v1934
    %v1936 = vpop.f32.mrf.mxu0
    %1937 = vmatprep.mubr.f32.mxu0 0.0
    %1938 = vmatmul.mubr.f32.gmra.mxu0 %v1693
    %v1939 = vpop.f32.mrf.mxu0
    %v1940 = vadd.f32 0.0, %v1939
    %v1941 = vpop.f32.mrf.mxu0
    %1942 = vdwg.mxu0
    %v1944 = vsel %vm1167, %v1856, 0
    %1946 = vmatprep.subr.mxu0 0.0
    %1947 = vmatpush1.msra.mxu0 0.0
    %1948 = vmatprep.subr.mxu0 0.0
    %1949 = vmatpush1.msra.mxu0 0.0
    %1950 = vmatprep.subr.mxu0 0.0
    %1951 = vmatpush1.msra.mxu0 0.0
    %1952 = vmatprep.subr.mxu0 0.0
    %1953 = vmatpush1.msra.mxu0 0.0
    %1954 = vmatprep.subr.mxu0 0.0
    %1955 = vmatpush1.msra.mxu0 0.0
    %1956 = vmatprep.subr.mxu0 0.0
    %1957 = vmatpush1.msra.mxu0 0.0
    %1958 = vmatprep.subr.mxu0 0.0
    %1959 = vmatpush1.msra.mxu0 0.0
    %1960 = vmatprep.subr.mxu0 0.0
    %1961 = vmatpush1.msra.mxu0 0.0
    %1962 = vmatprep.subr.mxu0 0.0
    %1963 = vmatpush1.msra.mxu0 0.0
    %1964 = vmatprep.subr.mxu0 0.0
    %1965 = vmatpush1.msra.mxu0 0.0
    %1966 = vmatprep.subr.mxu0 0.0
    %1967 = vmatpush1.msra.mxu0 0.0
    %1968 = vmatprep.subr.mxu0 0.0
    %1969 = vmatpush1.msra.mxu0 0.0
    %1970 = vmatprep.subr.mxu0 0.0
    %1971 = vmatpush1.msra.mxu0 0.0
    %1972 = vmatprep.subr.mxu0 0.0
    %1973 = vmatpush1.msra.mxu0 %v1944
    %1974 = vmatprep.subr.mxu0 0.0
    %1975 = vmatpush1.msra.mxu0 %v1851
    %1976 = vmatprep.subr.mxu0 0.0
    %1977 = vmatpush1.msra.mxu0 %v1846
    %1978 = vmatprep.subr.mxu0 0.0
    %1979 = vmatpush2.msra.mxu0 0.0
    %1980 = vmatprep.subr.mxu0 0.0
    %1981 = vmatpush2.msra.mxu0 0.0
    %1982 = vmatprep.subr.mxu0 0.0
    %1983 = vmatpush2.msra.mxu0 0.0
    %1984 = vmatprep.subr.mxu0 0.0
    %1985 = vmatpush2.msra.mxu0 0.0
    %1986 = vmatprep.subr.mxu0 0.0
    %1987 = vmatpush2.msra.mxu0 0.0
    %1988 = vmatprep.subr.mxu0 0.0
    %1989 = vmatpush2.msra.mxu0 0.0
    %1990 = vmatprep.subr.mxu0 0.0
    %1991 = vmatpush2.msra.mxu0 0.0
    %1992 = vmatprep.subr.mxu0 0.0
    %1993 = vmatpush2.msra.mxu0 0.0
    %1994 = vmatprep.subr.mxu0 0.0
    %1995 = vmatpush2.msra.mxu0 0.0
    %1996 = vmatprep.subr.mxu0 0.0
    %1997 = vmatpush2.msra.mxu0 0.0
    %1998 = vmatprep.subr.mxu0 0.0
    %1999 = vmatpush2.msra.mxu0 0.0
    %2000 = vmatprep.subr.mxu0 0.0
    %2001 = vmatpush2.msra.mxu0 0.0
    %2002 = vmatprep.subr.mxu0 0.0
    %2003 = vmatpush2.msra.mxu0 0.0
    %2004 = vmatprep.subr.mxu0 0.0
    %2005 = vmatpush2.msra.mxu0 0.0
    %2006 = vmatprep.subr.mxu0 0.0
    %2007 = vmatpush2.msra.mxu0 0.0
    %2008 = vmatprep.subr.mxu0 0.0
    %2009 = vmatpush2.msra.mxu0 0.0
    %2010 = vmatprep.mubr.f32.mxu0 0.0
    %2011 = vmatmul.mubr.f32.gmra.mxu0 %v1252
    %v2012 = vpop.f32.mrf.mxu0
    %v2013 = vadd.f32 0.0, %v2012
    %v2014 = vpop.f32.mrf.mxu0
    %2015 = vmatprep.mubr.f32.mxu0 0.0
    %2016 = vmatmul.mubr.f32.gmra.mxu0 %v1255
    %v2017 = vpop.f32.mrf.mxu0
    %v2018 = vadd.f32 0.0, %v2017
    %v2019 = vpop.f32.mrf.mxu0
    %2020 = vmatprep.mubr.f32.mxu0 0.0
    %2021 = vmatmul.mubr.f32.gmra.mxu0 %v1258
    %v2022 = vpop.f32.mrf.mxu0
    %v2023 = vadd.f32 0.0, %v2022
    %v2024 = vpop.f32.mrf.mxu0
    %2025 = vdwg.mxu0
    %v2027 = vsel %vm1167, %v1772, 0
    %2029 = vmatprep.subr.mxu0 0.0
    %2030 = vmatpush1.msra.mxu0 0.0
    %2031 = vmatprep.subr.mxu0 0.0
    %2032 = vmatpush1.msra.mxu0 0.0
    %2033 = vmatprep.subr.mxu0 0.0
    %2034 = vmatpush1.msra.mxu0 0.0
    %2035 = vmatprep.subr.mxu0 0.0
    %2036 = vmatpush1.msra.mxu0 0.0
    %2037 = vmatprep.subr.mxu0 0.0
    %2038 = vmatpush1.msra.mxu0 0.0
    %2039 = vmatprep.subr.mxu0 0.0
    %2040 = vmatpush1.msra.mxu0 0.0
    %2041 = vmatprep.subr.mxu0 0.0
    %2042 = vmatpush1.msra.mxu0 0.0
    %2043 = vmatprep.subr.mxu0 0.0
    %2044 = vmatpush1.msra.mxu0 0.0
    %2045 = vmatprep.subr.mxu0 0.0
    %2046 = vmatpush1.msra.mxu0 0.0
    %2047 = vmatprep.subr.mxu0 0.0
    %2048 = vmatpush1.msra.mxu0 0.0
    %2049 = vmatprep.subr.mxu0 0.0
    %2050 = vmatpush1.msra.mxu0 0.0
    %2051 = vmatprep.subr.mxu0 0.0
    %2052 = vmatpush1.msra.mxu0 0.0
    %2053 = vmatprep.subr.mxu0 0.0
    %2054 = vmatpush1.msra.mxu0 0.0
    %2055 = vmatprep.subr.mxu0 0.0
    %2056 = vmatpush1.msra.mxu0 %v2027
    %2057 = vmatprep.subr.mxu0 0.0
    %2058 = vmatpush1.msra.mxu0 %v1767
    %2059 = vmatprep.subr.mxu0 0.0
    %2060 = vmatpush1.msra.mxu0 %v1762
    %2061 = vmatprep.subr.mxu0 0.0
    %2062 = vmatpush2.msra.mxu0 0.0
    %2063 = vmatprep.subr.mxu0 0.0
    %2064 = vmatpush2.msra.mxu0 0.0
    %2065 = vmatprep.subr.mxu0 0.0
    %2066 = vmatpush2.msra.mxu0 0.0
    %2067 = vmatprep.subr.mxu0 0.0
    %2068 = vmatpush2.msra.mxu0 0.0
    %2069 = vmatprep.subr.mxu0 0.0
    %2070 = vmatpush2.msra.mxu0 0.0
    %2071 = vmatprep.subr.mxu0 0.0
    %2072 = vmatpush2.msra.mxu0 0.0
    %2073 = vmatprep.subr.mxu0 0.0
    %2074 = vmatpush2.msra.mxu0 0.0
    %2075 = vmatprep.subr.mxu0 0.0
    %2076 = vmatpush2.msra.mxu0 0.0
    %2077 = vmatprep.subr.mxu0 0.0
    %2078 = vmatpush2.msra.mxu0 0.0
    %2079 = vmatprep.subr.mxu0 0.0
    %2080 = vmatpush2.msra.mxu0 0.0
    %2081 = vmatprep.subr.mxu0 0.0
    %2082 = vmatpush2.msra.mxu0 0.0
    %2083 = vmatprep.subr.mxu0 0.0
    %2084 = vmatpush2.msra.mxu0 0.0
    %2085 = vmatprep.subr.mxu0 0.0
    %2086 = vmatpush2.msra.mxu0 0.0
    %2087 = vmatprep.subr.mxu0 0.0
    %2088 = vmatpush2.msra.mxu0 0.0
    %2089 = vmatprep.subr.mxu0 0.0
    %2090 = vmatpush2.msra.mxu0 0.0
    %2091 = vmatprep.subr.mxu0 0.0
    %2092 = vmatpush2.msra.mxu0 0.0
    %2093 = vmatprep.mubr.f32.mxu0 0.0
    %2094 = vmatmul.mubr.f32.gmra.mxu0 %v1159
    %v2095 = vpop.f32.mrf.mxu0
    %v2096 = vadd.f32 %v2013, %v2095
    %v2097 = vpop.f32.mrf.mxu0
    %2098 = vmatprep.mubr.f32.mxu0 0.0
    %2099 = vmatmul.mubr.f32.gmra.mxu0 %v1162
    %v2100 = vpop.f32.mrf.mxu0
    %v2101 = vadd.f32 %v2018, %v2100
    %v2102 = vpop.f32.mrf.mxu0
    %2103 = vmatprep.mubr.f32.mxu0 0.0
    %2104 = vmatmul.mubr.f32.gmra.mxu0 %v1165
    %v2105 = vpop.f32.mrf.mxu0
    %v2106 = vadd.f32 %v2023, %v2105
    %v2107 = vpop.f32.mrf.mxu0
    %2108 = vdwg.mxu0
    %v2109 = vadd.f32 %v2096, %v1930
    %v2110 = vadd.f32 %v2101, %v1935
    %v2111 = vadd.f32 %v2106, %v1940
    %v2112 = vlaneseq
    %v2113 = vshrl.u32 %v2112, 7
    %v2114 = vsub.s32 1, %v2113
    %v2115 = vrot.slane %v52, %v2114
    %v2116 = vadd.f32 %v2109, %v2115
    %v2117 = vadd.f32 %v2110, %v2115
    %v2118 = vadd.f32 %v2111, %v2115
    %v2119 = vsel %vm245, %v2116, 0.0
    %v2120 = vsel %vm245, %v2117, 0.0
    %v2121 = vadd.f32 %v2119, %v2120
    %vm2122 = vcmask 125952
    %v2123 = vsel %vm2122, %v2118, 0.0
    %v2124 = vadd.f32 %v2121, %v2123
    %v2125 = vrot.slane %v2124, 4
    %v2126 = vadd.f32 %v2124, %v2125
    %v2127 = vrot.slane %v2126, 2
    %v2128 = vadd.f32 %v2126, %v2127
    %v2129 = vrot.slane %v2128, 1
    %v2130 = vadd.f32 %v2128, %v2129
    %v2131 = vmul.f32 %v2130, %v1634
    %v2132 = vsub.f32 %v2116, %v2131
    %v2133 = vsub.f32 %v2117, %v2131
    %v2134 = vsub.f32 %v2118, %v2131
    %v2135 = vmul.f32 %v2132, %v2132
    %v2136 = vmul.f32 %v2133, %v2133
    %v2137 = vmul.f32 %v2134, %v2134
    %v2138 = vsel %vm245, %v2135, 0.0
    %v2139 = vsel %vm245, %v2136, 0.0
    %v2140 = vadd.f32 %v2138, %v2139
    %v2141 = vsel %vm2122, %v2137, 0.0
    %v2142 = vadd.f32 %v2140, %v2141
    %v2143 = vrot.slane %v2142, 4
    %v2144 = vadd.f32 %v2142, %v2143
    %v2145 = vrot.slane %v2144, 2
    %v2146 = vadd.f32 %v2144, %v2145
    %v2147 = vrot.slane %v2146, 1
    %v2148 = vadd.f32 %v2146, %v2147
    %v2149 = vmul.f32 %v2148, %v1634
    %v2150 = vadd.f32 %v2149, 1e-05
    %v2151 = vrsqrt.pop %v2150
    %v2152 = vmul.f32 %v2132, %v2151
    %v2153 = vmul.f32 %v2133, %v2151
    %v2154 = vmul.f32 %v2134, %v2151
    %v2155 = vlaneseq
    %v2156 = vshrl.u32 %v2155, 7
    %v2157 = vsub.s32 2, %v2156
    %v2158 = vrot.slane %v52, %v2157
    %v2159 = vmul.f32 %v2152, %v2158
    %v2160 = vmul.f32 %v2153, %v2158
    %v2161 = vmul.f32 %v2154, %v2158
    %v2162 = vlaneseq
    %v2163 = vshrl.u32 %v2162, 7
    %v2164 = vsub.s32 3, %v2163
    %v2165 = vrot.slane %v52, %v2164
    %v2166 = vadd.f32 %v2159, %v2165
    %v2167 = vadd.f32 %v2160, %v2165
    %v2168 = vadd.f32 %v2161, %v2165
    %vm2169 = vcmp.ge.f32.partialorder %v2166, 0.0
    %vm2170 = vcmp.ge.f32.partialorder %v2167, 0.0
    %vm2171 = vcmp.ge.f32.partialorder %v2168, 0.0
    %v2172 = vmul.f32 %v2166, 0.01
    %v2173 = vmul.f32 %v2167, 0.01
    %v2174 = vmul.f32 %v2168, 0.01
    %v2175 = vsel %vm2169, %v2166, %v2172
    %v2176 = vsel %vm2170, %v2167, %v2173
    %v2177 = vsel %vm2171, %v2168, %v2174
    %v2178 = vld [vmem:[%s7] sm:$0x3]
    %v2180 = vsel %vm1157, %v2178, 0
    %v2183 = vsel %vm1167, %v2177, 0
    %2185 = vmatprep.subr.mxu0 0.0
    %2186 = vmatpush1.msra.mxu0 0.0
    %2187 = vmatprep.subr.mxu0 0.0
    %2188 = vmatpush1.msra.mxu0 0.0
    %2189 = vmatprep.subr.mxu0 0.0
    %2190 = vmatpush1.msra.mxu0 0.0
    %2191 = vmatprep.subr.mxu0 0.0
    %2192 = vmatpush1.msra.mxu0 0.0
    %2193 = vmatprep.subr.mxu0 0.0
    %2194 = vmatpush1.msra.mxu0 0.0
    %2195 = vmatprep.subr.mxu0 0.0
    %2196 = vmatpush1.msra.mxu0 0.0
    %2197 = vmatprep.subr.mxu0 0.0
    %2198 = vmatpush1.msra.mxu0 0.0
    %2199 = vmatprep.subr.mxu0 0.0
    %2200 = vmatpush1.msra.mxu0 0.0
    %2201 = vmatprep.subr.mxu0 0.0
    %2202 = vmatpush1.msra.mxu0 0.0
    %2203 = vmatprep.subr.mxu0 0.0
    %2204 = vmatpush1.msra.mxu0 0.0
    %2205 = vmatprep.subr.mxu0 0.0
    %2206 = vmatpush1.msra.mxu0 0.0
    %2207 = vmatprep.subr.mxu0 0.0
    %2208 = vmatpush1.msra.mxu0 0.0
    %2209 = vmatprep.subr.mxu0 0.0
    %2210 = vmatpush1.msra.mxu0 0.0
    %2211 = vmatprep.subr.mxu0 0.0
    %2212 = vmatpush1.msra.mxu0 %v2183
    %2213 = vmatprep.subr.mxu0 0.0
    %2214 = vmatpush1.msra.mxu0 %v2176
    %2215 = vmatprep.subr.mxu0 0.0
    %2216 = vmatpush1.msra.mxu0 %v2175
    %2217 = vmatprep.subr.mxu0 0.0
    %2218 = vmatpush2.msra.mxu0 0.0
    %2219 = vmatprep.subr.mxu0 0.0
    %2220 = vmatpush2.msra.mxu0 0.0
    %2221 = vmatprep.subr.mxu0 0.0
    %2222 = vmatpush2.msra.mxu0 0.0
    %2223 = vmatprep.subr.mxu0 0.0
    %2224 = vmatpush2.msra.mxu0 0.0
    %2225 = vmatprep.subr.mxu0 0.0
    %2226 = vmatpush2.msra.mxu0 0.0
    %2227 = vmatprep.subr.mxu0 0.0
    %2228 = vmatpush2.msra.mxu0 0.0
    %2229 = vmatprep.subr.mxu0 0.0
    %2230 = vmatpush2.msra.mxu0 0.0
    %2231 = vmatprep.subr.mxu0 0.0
    %2232 = vmatpush2.msra.mxu0 0.0
    %2233 = vmatprep.subr.mxu0 0.0
    %2234 = vmatpush2.msra.mxu0 0.0
    %2235 = vmatprep.subr.mxu0 0.0
    %2236 = vmatpush2.msra.mxu0 0.0
    %2237 = vmatprep.subr.mxu0 0.0
    %2238 = vmatpush2.msra.mxu0 0.0
    %2239 = vmatprep.subr.mxu0 0.0
    %2240 = vmatpush2.msra.mxu0 0.0
    %2241 = vmatprep.subr.mxu0 0.0
    %2242 = vmatpush2.msra.mxu0 0.0
    %2243 = vmatprep.subr.mxu0 0.0
    %2244 = vmatpush2.msra.mxu0 0.0
    %2245 = vmatprep.subr.mxu0 0.0
    %2246 = vmatpush2.msra.mxu0 0.0
    %2247 = vmatprep.subr.mxu0 0.0
    %2248 = vmatpush2.msra.mxu0 0.0
    %2249 = vmatprep.mubr.f32.mxu0 0.0
    %2250 = vmatmul.mubr.f32.gmra.mxu0 %v2180
    %v2251 = vpop.f32.mrf.mxu0
    %v2252 = vadd.f32 0.0, %v2251
    %v2253 = vpop.f32.mrf.mxu0
    %2254 = vdwg.mxu0
    %v2255 = vld [vmem:[%s12] sm:$0xff]
    %v2256 = vld [vmem:[%s12 + $0x8] sm:$0xff]
    %v2257 = vld [vmem:[%s12 + $0x10] sm:$0xff]
    %v2258 = vld [vmem:[%s12 + $0x18] sm:$0xff]
    %v2260 = vsel %vm245, %v2252, 0
    %2262 = vmatprep.subr.mxu0 0.0
    %2263 = vmatpush1.msra.mxu0 0.0
    %2264 = vmatprep.subr.mxu0 0.0
    %2265 = vmatpush1.msra.mxu0 0.0
    %2266 = vmatprep.subr.mxu0 0.0
    %2267 = vmatpush1.msra.mxu0 0.0
    %2268 = vmatprep.subr.mxu0 0.0
    %2269 = vmatpush1.msra.mxu0 0.0
    %2270 = vmatprep.subr.mxu0 0.0
    %2271 = vmatpush1.msra.mxu0 0.0
    %2272 = vmatprep.subr.mxu0 0.0
    %2273 = vmatpush1.msra.mxu0 0.0
    %2274 = vmatprep.subr.mxu0 0.0
    %2275 = vmatpush1.msra.mxu0 0.0
    %2276 = vmatprep.subr.mxu0 0.0
    %2277 = vmatpush1.msra.mxu0 0.0
    %2278 = vmatprep.subr.mxu0 0.0
    %2279 = vmatpush1.msra.mxu0 0.0
    %2280 = vmatprep.subr.mxu0 0.0
    %2281 = vmatpush1.msra.mxu0 0.0
    %2282 = vmatprep.subr.mxu0 0.0
    %2283 = vmatpush1.msra.mxu0 0.0
    %2284 = vmatprep.subr.mxu0 0.0
    %2285 = vmatpush1.msra.mxu0 0.0
    %2286 = vmatprep.subr.mxu0 0.0
    %2287 = vmatpush1.msra.mxu0 0.0
    %2288 = vmatprep.subr.mxu0 0.0
    %2289 = vmatpush1.msra.mxu0 0.0
    %2290 = vmatprep.subr.mxu0 0.0
    %2291 = vmatpush1.msra.mxu0 %v2258
    %2292 = vmatprep.subr.mxu0 0.0
    %2293 = vmatpush1.msra.mxu0 %v2257
    %2294 = vmatprep.subr.mxu0 0.0
    %2295 = vmatpush2.msra.mxu0 0.0
    %2296 = vmatprep.subr.mxu0 0.0
    %2297 = vmatpush2.msra.mxu0 0.0
    %2298 = vmatprep.subr.mxu0 0.0
    %2299 = vmatpush2.msra.mxu0 0.0
    %2300 = vmatprep.subr.mxu0 0.0
    %2301 = vmatpush2.msra.mxu0 0.0
    %2302 = vmatprep.subr.mxu0 0.0
    %2303 = vmatpush2.msra.mxu0 0.0
    %2304 = vmatprep.subr.mxu0 0.0
    %2305 = vmatpush2.msra.mxu0 0.0
    %2306 = vmatprep.subr.mxu0 0.0
    %2307 = vmatpush2.msra.mxu0 0.0
    %2308 = vmatprep.subr.mxu0 0.0
    %2309 = vmatpush2.msra.mxu0 0.0
    %2310 = vmatprep.subr.mxu0 0.0
    %2311 = vmatpush2.msra.mxu0 0.0
    %2312 = vmatprep.subr.mxu0 0.0
    %2313 = vmatpush2.msra.mxu0 0.0
    %2314 = vmatprep.subr.mxu0 0.0
    %2315 = vmatpush2.msra.mxu0 0.0
    %2316 = vmatprep.subr.mxu0 0.0
    %2317 = vmatpush2.msra.mxu0 0.0
    %2318 = vmatprep.subr.mxu0 0.0
    %2319 = vmatpush2.msra.mxu0 0.0
    %2320 = vmatprep.subr.mxu0 0.0
    %2321 = vmatpush2.msra.mxu0 0.0
    %2322 = vmatprep.subr.mxu0 0.0
    %2323 = vmatpush2.msra.mxu0 0.0
    %2324 = vmatprep.subr.mxu0 0.0
    %2325 = vmatpush2.msra.mxu0 0.0
    %2326 = vmatprep.mubr.f32.mxu0 0.0
    %2327 = vmatmul.mubr.f32.gmra.mxu0 %v2260
    %v2328 = vpop.f32.mrf.mxu0
    %v2329 = vadd.f32 0.0, %v2328
    %v2330 = vpop.f32.mrf.mxu0
    %2331 = vdwg.mxu0
    %v2333 = vsel %vm245, %v1145, 0
    %2335 = vmatprep.subr.mxu0 0.0
    %2336 = vmatpush1.msra.mxu0 0.0
    %2337 = vmatprep.subr.mxu0 0.0
    %2338 = vmatpush1.msra.mxu0 0.0
    %2339 = vmatprep.subr.mxu0 0.0
    %2340 = vmatpush1.msra.mxu0 0.0
    %2341 = vmatprep.subr.mxu0 0.0
    %2342 = vmatpush1.msra.mxu0 0.0
    %2343 = vmatprep.subr.mxu0 0.0
    %2344 = vmatpush1.msra.mxu0 0.0
    %2345 = vmatprep.subr.mxu0 0.0
    %2346 = vmatpush1.msra.mxu0 0.0
    %2347 = vmatprep.subr.mxu0 0.0
    %2348 = vmatpush1.msra.mxu0 0.0
    %2349 = vmatprep.subr.mxu0 0.0
    %2350 = vmatpush1.msra.mxu0 0.0
    %2351 = vmatprep.subr.mxu0 0.0
    %2352 = vmatpush1.msra.mxu0 0.0
    %2353 = vmatprep.subr.mxu0 0.0
    %2354 = vmatpush1.msra.mxu0 0.0
    %2355 = vmatprep.subr.mxu0 0.0
    %2356 = vmatpush1.msra.mxu0 0.0
    %2357 = vmatprep.subr.mxu0 0.0
    %2358 = vmatpush1.msra.mxu0 0.0
    %2359 = vmatprep.subr.mxu0 0.0
    %2360 = vmatpush1.msra.mxu0 0.0
    %2361 = vmatprep.subr.mxu0 0.0
    %2362 = vmatpush1.msra.mxu0 0.0
    %2363 = vmatprep.subr.mxu0 0.0
    %2364 = vmatpush1.msra.mxu0 %v2256
    %2365 = vmatprep.subr.mxu0 0.0
    %2366 = vmatpush1.msra.mxu0 %v2255
    %2367 = vmatprep.subr.mxu0 0.0
    %2368 = vmatpush2.msra.mxu0 0.0
    %2369 = vmatprep.subr.mxu0 0.0
    %2370 = vmatpush2.msra.mxu0 0.0
    %2371 = vmatprep.subr.mxu0 0.0
    %2372 = vmatpush2.msra.mxu0 0.0
    %2373 = vmatprep.subr.mxu0 0.0
    %2374 = vmatpush2.msra.mxu0 0.0
    %2375 = vmatprep.subr.mxu0 0.0
    %2376 = vmatpush2.msra.mxu0 0.0
    %2377 = vmatprep.subr.mxu0 0.0
    %2378 = vmatpush2.msra.mxu0 0.0
    %2379 = vmatprep.subr.mxu0 0.0
    %2380 = vmatpush2.msra.mxu0 0.0
    %2381 = vmatprep.subr.mxu0 0.0
    %2382 = vmatpush2.msra.mxu0 0.0
    %2383 = vmatprep.subr.mxu0 0.0
    %2384 = vmatpush2.msra.mxu0 0.0
    %2385 = vmatprep.subr.mxu0 0.0
    %2386 = vmatpush2.msra.mxu0 0.0
    %2387 = vmatprep.subr.mxu0 0.0
    %2388 = vmatpush2.msra.mxu0 0.0
    %2389 = vmatprep.subr.mxu0 0.0
    %2390 = vmatpush2.msra.mxu0 0.0
    %2391 = vmatprep.subr.mxu0 0.0
    %2392 = vmatpush2.msra.mxu0 0.0
    %2393 = vmatprep.subr.mxu0 0.0
    %2394 = vmatpush2.msra.mxu0 0.0
    %2395 = vmatprep.subr.mxu0 0.0
    %2396 = vmatpush2.msra.mxu0 0.0
    %2397 = vmatprep.subr.mxu0 0.0
    %2398 = vmatpush2.msra.mxu0 0.0
    %2399 = vmatprep.mubr.f32.mxu0 0.0
    %2400 = vmatmul.mubr.f32.gmra.mxu0 %v2333
    %v2401 = vpop.f32.mrf.mxu0
    %v2402 = vadd.f32 %v2329, %v2401
    %v2403 = vpop.f32.mrf.mxu0
    %2404 = vdwg.mxu0
    %v2405 = vlaneseq
    %v2406 = vshrl.u32 %v2405, 7
    %v2407 = vsub.s32 4, %v2406
    %v2408 = vrot.slane %v52, %v2407
    %v2409 = vadd.f32 %v2402, %v2408
    %v2410 = vmax.f32 %v2409, 0.0
    %v2411 = vld [vmem:[%s13] sm:$0xff]
    %v2412 = vld [vmem:[%s13 + $0x8] sm:$0xff]
    %v2413 = vlaneseq
    %v2414 = vshrl.u32 %v2413, 7
    %v2415 = vsub.s32 5, %v2414
    %v2416 = vrot.slane %v52, %v2415
    %v2418 = vsel %vm245, %v2410, 0
    %2420 = vmatprep.subr.mxu0 0.0
    %2421 = vmatpush1.msra.mxu0 0.0
    %2422 = vmatprep.subr.mxu0 0.0
    %2423 = vmatpush1.msra.mxu0 0.0
    %2424 = vmatprep.subr.mxu0 0.0
    %2425 = vmatpush1.msra.mxu0 0.0
    %2426 = vmatprep.subr.mxu0 0.0
    %2427 = vmatpush1.msra.mxu0 0.0
    %2428 = vmatprep.subr.mxu0 0.0
    %2429 = vmatpush1.msra.mxu0 0.0
    %2430 = vmatprep.subr.mxu0 0.0
    %2431 = vmatpush1.msra.mxu0 0.0
    %2432 = vmatprep.subr.mxu0 0.0
    %2433 = vmatpush1.msra.mxu0 0.0
    %2434 = vmatprep.subr.mxu0 0.0
    %2435 = vmatpush1.msra.mxu0 0.0
    %2436 = vmatprep.subr.mxu0 0.0
    %2437 = vmatpush1.msra.mxu0 0.0
    %2438 = vmatprep.subr.mxu0 0.0
    %2439 = vmatpush1.msra.mxu0 0.0
    %2440 = vmatprep.subr.mxu0 0.0
    %2441 = vmatpush1.msra.mxu0 0.0
    %2442 = vmatprep.subr.mxu0 0.0
    %2443 = vmatpush1.msra.mxu0 0.0
    %2444 = vmatprep.subr.mxu0 0.0
    %2445 = vmatpush1.msra.mxu0 0.0
    %2446 = vmatprep.subr.mxu0 0.0
    %2447 = vmatpush1.msra.mxu0 0.0
    %2448 = vmatprep.subr.mxu0 0.0
    %2449 = vmatpush1.msra.mxu0 %v2412
    %2450 = vmatprep.subr.mxu0 0.0
    %2451 = vmatpush1.msra.mxu0 %v2411
    %2452 = vmatprep.subr.mxu0 0.0
    %2453 = vmatpush2.msra.mxu0 0.0
    %2454 = vmatprep.subr.mxu0 0.0
    %2455 = vmatpush2.msra.mxu0 0.0
    %2456 = vmatprep.subr.mxu0 0.0
    %2457 = vmatpush2.msra.mxu0 0.0
    %2458 = vmatprep.subr.mxu0 0.0
    %2459 = vmatpush2.msra.mxu0 0.0
    %2460 = vmatprep.subr.mxu0 0.0
    %2461 = vmatpush2.msra.mxu0 0.0
    %2462 = vmatprep.subr.mxu0 0.0
    %2463 = vmatpush2.msra.mxu0 0.0
    %2464 = vmatprep.subr.mxu0 0.0
    %2465 = vmatpush2.msra.mxu0 0.0
    %2466 = vmatprep.subr.mxu0 0.0
    %2467 = vmatpush2.msra.mxu0 0.0
    %2468 = vmatprep.subr.mxu0 0.0
    %2469 = vmatpush2.msra.mxu0 0.0
    %2470 = vmatprep.subr.mxu0 0.0
    %2471 = vmatpush2.msra.mxu0 0.0
    %2472 = vmatprep.subr.mxu0 0.0
    %2473 = vmatpush2.msra.mxu0 0.0
    %2474 = vmatprep.subr.mxu0 0.0
    %2475 = vmatpush2.msra.mxu0 0.0
    %2476 = vmatprep.subr.mxu0 0.0
    %2477 = vmatpush2.msra.mxu0 0.0
    %2478 = vmatprep.subr.mxu0 0.0
    %2479 = vmatpush2.msra.mxu0 0.0
    %2480 = vmatprep.subr.mxu0 0.0
    %2481 = vmatpush2.msra.mxu0 0.0
    %2482 = vmatprep.subr.mxu0 0.0
    %2483 = vmatpush2.msra.mxu0 0.0
    %2484 = vmatprep.mubr.f32.mxu0 0.0
    %2485 = vmatmul.mubr.f32.gmra.mxu0 %v2418
    %v2486 = vpop.f32.mrf.mxu0
    %v2487 = vadd.f32 %v2416, %v2486
    %v2488 = vpop.f32.mrf.mxu0
    %2489 = vdwg.mxu0
    %v2490 = vlaneseq
    %v2491 = vand.u32 %v2490, 127
    %vm2492 = vcmp.lt.s32.totalorder %v2491, 2
    %v2493 = vsel %vm2492, %v2487, -1e+30
    %vm2494 = vcmask 1041408
    %v2495 = vsel %vm2494, %v2493, -inf
    %2496 = vmax.xlane.f32.xlu0 %v2495
    %v2497 = vpop.xlane.xlu0 %2496
    %v2498 = vsub.f32 %v2493, %v2497
    %v2499 = vmul.f32 %v2498, 1.442695
    %v2500 = vpow.pop %v2499
    %v2501 = vsel %vm2492, %v2500, 0.0
    %v2502 = vsel %vm2494, %v2501, 0.0
    %2503 = vadd.xlane.f32.xlu0 %v2502
    %v2504 = vpop.xlane.xlu0 %2503
    %v2505 = vlog2.pop %v2504
    %v2506 = vmul.f32 %v2505, 0.6931472
    %v2507 = vsub.f32 %v2498, %v2506
    %v2508 = vsel %vm2492, %v2507, 0.0
    %2509 = vst [vmem:[#allocation2] sm:$0x3] %v2508
    // Predicated region
    $region62: #{_gcn_net_forward_impl.1} parent=1 // pred_check
      _
    $region63: #{_gcn_net_forward_impl.1} parent=1 // pred_check_branch
      %2511 = sbr.rel (0) target = $region65
    $region64: #{_gcn_net_forward_impl.1} parent=1 // pred_region
      %s2513 = ssub.s32 32, 32
      %2514 = vsyncadd [#allocation3], %s2513
      %s2516 = sshll.u32 [#allocation2], 4
      %s2517 = int_to_ptr.vmem [resolvable:$true] %s2516
      %2519 = dma.vmem_to_hbm [thread:$0]  %s2517, 32, %s15, [#allocation3]
    $region65: #{_gcn_net_forward_impl.1} parent=1 // pred_fallthru
      _
    // Predicated region
    $region66: #{_gcn_net_forward_impl.1} parent=1 // pred_check
      _
    $region67: #{_gcn_net_forward_impl.1} parent=1 // pred_check_branch
      %2521 = sbr.rel (0) target = $region69
    $region68: #{_gcn_net_forward_impl.1} parent=1 // pred_region
      %2522 = dma.done [#allocation3], 32
    $region69: #{_gcn_net_forward_impl.1} parent=1 // pred_fallthru
      _
    %2523 = vsyncpa [#allocation3], 1

</llo_original>
